<compile_context>
chip_gen: v6e
topology: v6e:2x2x1
jax: 0.10.0
libtpu: 0.0.40
codegen_flags: <defaults>
</compile_context>

<pallas_src>
import functools

import jax
import jax.numpy as jnp
from jax import lax
from jax.experimental import pallas as pl
from jax.experimental.pallas import tpu as pltpu


VMEM_LIMIT = 32 * 1024 * 1024  # safe scoped-VMEM limit on v5e / v6e / v7x


# ------------------------------- helpers --------------------------------------
def make_divisible(v, divisor=8, min_value=None):
    min_value = min_value or divisor
    new_v = max(min_value, int(v + divisor / 2) // divisor * divisor)
    if new_v < 0.9 * v:
        new_v += divisor
    return new_v


def _pick_row_tile(H, W):
    """Rows per grid step: >= 2 row blocks when possible (megacore work on v7x
    even at batch 1) while keeping the per-block working set small."""
    th = H
    target_pixels = 4096  # tiny vs VMEM even at 512 channels, f32
    while th % 2 == 0 and th > 1 and (th == H or th * W > target_pixels):
        th //= 2
    return th


# ----------------------------- fused Pallas kernel ------------------------------
def _ccr_fused_kernel(xc_ref, xt_ref, xb_ref, w1_ref, wd_ref, w2_ref,
                      b1_ref, b2_ref, b3_ref, o_ref, *, kh, kw, H, has_residual):
    """Fused CondConv pw(1x1)+BN1+ReLU -> dw(3x3)+BN2+ReLU -> pwl(1x1)+BN3(+res).

    Per grid step (sample b, row-block m):
      xc_ref: (1, TH, W, Cin)  f32  rows [m*TH, (m+1)*TH) of sample b (also residual)
      xt_ref: (1, 1,  W, Cin)  f32  halo row above (index clamped at image top)
      xb_ref: (1, 1,  W, Cin)  f32  halo row below (index clamped at image bottom)
      w1_ref: (1, Cin, mid)    f32  per-sample mixed pw  weight, BN1 scale folded
      wd_ref: (1, kh*kw, mid)  f32  per-sample mixed dw  taps,   BN2 scale folded
      w2_ref: (1, mid, Cout)   f32  per-sample mixed pwl weight, BN3 scale folded
      b1/b2/b3_ref: (1, C)     f32  folded BN biases
      o_ref : (1, TH*W, Cout)
    All intermediates (y1, y2) stay in VMEM / vregs; nothing goes back to HBM.
    """
    _, th, W, cin = xc_ref.shape
    mid = w1_ref.shape[2]
    pad_h = (kh - 1) // 2
    pad_w = (kw - 1) // 2
    thh = th + 2 * pad_h
    m = pl.program_id(1)

    xc = xc_ref[0]                                                   # (th, W, cin)
    xh = jnp.concatenate([xt_ref[0], xc, xb_ref[0]], axis=0)         # (thh, W, cin)

    # ---- stage 1: CondConv 1x1 (conv_pw) + BN1 + ReLU over th + halo rows ----
    y1 = jnp.dot(xh.reshape(thh * W, cin), w1_ref[0],
                 preferred_element_type=jnp.float32)                 # (thh*W, mid)
    y1 = jnp.maximum(y1 + b1_ref[...], 0.0).reshape(thh, W, mid)

    # Rows outside the image must be exactly 0 for the depthwise zero padding:
    # ReLU(b1) != 0, and boundary halo rows were clamped onto valid rows.
    row = lax.broadcasted_iota(jnp.int32, (thh, 1, 1), 0)
    g_row = m * th + row - pad_h
    y1 = jnp.where((g_row >= 0) & (g_row < H), y1, 0.0)

    # ---- stage 2: CondConv depthwise kh x kw (conv_dw) + BN2 + ReLU (VPU) ----
    # Column taps: XLU roll along the sublane (W) axis + edge mask (avoids
    # sublane-misaligned slices).  Row taps: cheap leading-axis slices.
    wd = wd_ref[0]                                                   # (kh*kw, mid)
    col = lax.broadcasted_iota(jnp.int32, (1, W, 1), 1)
    acc = jnp.zeros((th, W, mid), jnp.float32)
    for j in range(kw):                                              # static unroll
        dj = j - pad_w
        if dj == 0:
            shifted = y1
        else:
            shifted = pltpu.roll(y1, (-dj) % W, axis=1)              # col w -> w + dj
            valid = (col < W - dj) if dj > 0 else (col >= -dj)
            shifted = jnp.where(valid, shifted, 0.0)
        for i in range(kh):
            t = i * kw + j
            acc = acc + shifted[i:i + th] * wd[t:t + 1, :]
    y2 = jnp.maximum(acc + b2_ref[...], 0.0)                         # (th, W, mid)

    # TODO(synk): SqueezeExcite branch not implemented (module default se_ratio=0.0).

    # ---- stage 3: CondConv 1x1 (conv_pwl) + BN3 (+ residual) ----
    out = jnp.dot(y2.reshape(th * W, mid), w2_ref[0],
                  preferred_element_type=jnp.float32) + b3_ref[...]  # (th*W, cout)
    if has_residual:
        # TODO(synk): drop_connect is a training-only no-op at inference.
        out = out + xc.reshape(th * W, cin)                          # cin == cout here
    o_ref[0] = out.astype(o_ref.dtype)


# ------------------------------- forward (wrapper) ------------------------------
def cond_conv_residual_forward(x_nchw, p, *, eps=1e-5):
    """CondConvResidual forward (inference). x_nchw: (N, Cin, H, W)."""
    N, Cin, H, W = x_nchw.shape
    E, mid, _ = p["w_pw"].shape
    Cout = p["w_pwl"].shape[1]
    kh, kw = p["w_dw"].shape[-2:]
    assert kh == 3 and kw % 2 == 1, \
        "TODO(synk): only a 1-row halo (3-row dw kernel) is wired up"
    # TODO(synk): stride > 1 depthwise (downsampling) not implemented; module default stride=1.
    stride = 1
    has_residual = (Cin == Cout) and (stride == 1)

    x_nhwc = jnp.transpose(x_nchw, (0, 2, 3, 1)).astype(jnp.float32)  # (N, H, W, Cin)

    # ---- routing: global avg pool -> Linear -> sigmoid (tiny, JAX glue) ----
    pooled = jnp.mean(x_nhwc, axis=(1, 2))                                    # (N, Cin)
    routing = jax.nn.sigmoid(pooled @ p["routing_w"].T + p["routing_b"])      # (N, E)

    # ---- fold BN (inference) into per-sample mixed expert weights (tiny glue) ----
    s1 = p["g1"] / jnp.sqrt(p["v1"] + eps); b1 = p["b1"] - p["m1"] * s1
    s2 = p["g2"] / jnp.sqrt(p["v2"] + eps); b2 = p["b2"] - p["m2"] * s2
    s3 = p["g3"] / jnp.sqrt(p["v3"] + eps); b3 = p["b3"] - p["m3"] * s3
    w1 = jnp.einsum("be,eoc->bco", routing, p["w_pw"]) * s1[None, None, :]    # (N, Cin, mid)
    wd = (jnp.einsum("be,ecij->bijc", routing, p["w_dw"])
          * s2[None, None, None, :]).reshape(N, kh * kw, mid)                 # (N, kh*kw, mid)
    w2 = jnp.einsum("be,eoc->bco", routing, p["w_pwl"]) * s3[None, None, :]   # (N, mid, Cout)

    # ---- single fused pallas_call, grid = (sample, row-block with 1-row halo) ----
    TH = _pick_row_tile(H, W)
    n_hb = H // TH

    # Halo rows come from the SAME unpadded x array via clamped index maps; the
    # out-of-image case is zeroed inside the kernel (no HBM copy of x at all).
    halo_top = lambda b, m_: (b, jnp.maximum(m_ * TH - 1, 0), 0, 0)
    halo_bot = lambda b, m_: (b, jnp.minimum(m_ * TH + TH, H - 1), 0, 0)

    kernel = functools.partial(_ccr_fused_kernel, kh=kh, kw=kw, H=H,
                               has_residual=has_residual)
    out_flat = pl.pallas_call(
        kernel,
        out_shape=jax.ShapeDtypeStruct((N, H * W, Cout), jnp.float32),
        grid=(N, n_hb),
        in_specs=[
            pl.BlockSpec((1, TH, W, Cin), lambda b, m_: (b, m_, 0, 0)),   # x rows (+ residual)
            pl.BlockSpec((1, 1, W, Cin), halo_top),                       # 1-row halo above
            pl.BlockSpec((1, 1, W, Cin), halo_bot),                       # 1-row halo below
            pl.BlockSpec((1, Cin, mid), lambda b, m_: (b, 0, 0)),         # w1 (revisited over m)
            pl.BlockSpec((1, kh * kw, mid), lambda b, m_: (b, 0, 0)),     # dw taps
            pl.BlockSpec((1, mid, Cout), lambda b, m_: (b, 0, 0)),        # w2
            pl.BlockSpec((1, mid), lambda b, m_: (0, 0)),                 # BN1 bias
            pl.BlockSpec((1, mid), lambda b, m_: (0, 0)),                 # BN2 bias
            pl.BlockSpec((1, Cout), lambda b, m_: (0, 0)),                # BN3 bias
        ],
        out_specs=pl.BlockSpec((1, TH * W, Cout), lambda b, m_: (b, m_, 0)),
        compiler_params=pltpu.CompilerParams(
            dimension_semantics=("parallel", "parallel"),
            vmem_limit_bytes=VMEM_LIMIT),
    )(x_nhwc, x_nhwc, x_nhwc, w1, wd, w2,
      b1.reshape(1, mid), b2.reshape(1, mid), b3.reshape(1, Cout))

    out = out_flat.reshape(N, H, W, Cout)
    return jnp.transpose(out, (0, 3, 1, 2))                          # back to NCHW


# ------------------------------- pure-JAX reference ------------------------------
def cond_conv_residual_ref(x, p, *, eps=1e-5):
    N, Cin, H, W = x.shape
    pooled = jnp.mean(x, axis=(2, 3))
    routing = jax.nn.sigmoid(pooled @ p["routing_w"].T + p["routing_b"])

    def bn(y, g, b, m, v):
        s = g / jnp.sqrt(v + eps)
        return y * s[None, :, None, None] + (b - m * s)[None, :, None, None]

    # conv_pw (1x1) with per-sample mixed weights
    w1 = jnp.einsum("be,eoc->boc", routing, p["w_pw"])          # (N, mid, Cin)
    y = jnp.einsum("bchw,boc->bohw", x, w1)
    y = jax.nn.relu(bn(y, p["g1"], p["b1"], p["m1"], p["v1"]))
    # conv_dw (depthwise 3x3, stride 1, pad 1)
    wdw = jnp.einsum("be,ecij->bcij", routing, p["w_dw"])       # (N, mid, 3, 3)
    yp = jnp.pad(y, ((0, 0), (0, 0), (1, 1), (1, 1)))
    z = jnp.zeros_like(y)
    for i in range(3):
        for j in range(3):
            z = z + yp[:, :, i:i + H, j:j + W] * wdw[:, :, i, j][:, :, None, None]
    z = jax.nn.relu(bn(z, p["g2"], p["b2"], p["m2"], p["v2"]))
    # conv_pwl (1x1)
    w2 = jnp.einsum("be,eoc->boc", routing, p["w_pwl"])         # (N, Cout, mid)
    o = jnp.einsum("bchw,boc->bohw", z, w2)
    o = bn(o, p["g3"], p["b3"], p["m3"], p["v3"])
    return o + x                                                # residual (in==out, stride 1)


# ------------------------------------- main --------------------------------------
if __name__ == "__main__":
    # CondConvResidual(in_chs=4, out_chs=4, dw_kernel_size=3, stride=1,
    #                  exp_ratio=1.0, num_experts=4)  -> mid_chs = make_divisible(4) = 8
    N, Cin, H, W = 2, 4, 16, 16
    Cout = Cin
    E = 4
    mid = make_divisible(int(Cin * 1.0))

    key = jax.random.PRNGKey(0)
    ks = jax.random.split(key, 20)
    f32 = jnp.float32

    x = jax.random.normal(ks[0], (N, Cin, H, W), f32)
    p = dict(
        routing_w=0.5 * jax.random.normal(ks[1], (E, Cin), f32),
        routing_b=0.1 * jax.random.normal(ks[2], (E,), f32),
        w_pw=0.1 * jax.random.normal(ks[3], (E, mid, Cin), f32),
        w_dw=0.1 * jax.random.normal(ks[4], (E, mid, 3, 3), f32),
        w_pwl=0.1 * jax.random.normal(ks[5], (E, Cout, mid), f32),
        g1=1.0 + 0.1 * jax.random.normal(ks[6], (mid,), f32),
        b1=0.1 * jax.random.normal(ks[7], (mid,), f32),
        m1=0.1 * jax.random.normal(ks[8], (mid,), f32),
        v1=jnp.abs(jax.random.normal(ks[9], (mid,), f32)) + 0.5,
        g2=1.0 + 0.1 * jax.random.normal(ks[10], (mid,), f32),
        b2=0.1 * jax.random.normal(ks[11], (mid,), f32),
        m2=0.1 * jax.random.normal(ks[12], (mid,), f32),
        v2=jnp.abs(jax.random.normal(ks[13], (mid,), f32)) + 0.5,
        g3=1.0 + 0.1 * jax.random.normal(ks[14], (Cout,), f32),
        b3=0.1 * jax.random.normal(ks[15], (Cout,), f32),
        m3=0.1 * jax.random.normal(ks[16], (Cout,), f32),
        v3=jnp.abs(jax.random.normal(ks[17], (Cout,), f32)) + 0.5,
    )

    fwd = jax.jit(cond_conv_residual_forward)
    out = jax.block_until_ready(fwd(x, p))
    ref = jax.block_until_ready(cond_conv_residual_ref(x, p))

    assert out.shape == (N, Cout, H, W), out.shape
    max_err = float(jnp.max(jnp.abs(out - ref)))
    assert jnp.allclose(out, ref, atol=2e-3, rtol=2e-3), max_err

    print("KERNEL_OK")
</pallas_src>

<mosaic_0001>
module attributes {stable_mosaic.version = 11 : i64} {
  func.func @_ccr_fused_kernel(%arg0: i32, %arg1: i32, %arg2: memref<1x8x16x4xf32, #tpu.memory_space<vmem>>, %arg3: memref<1x1x16x4xf32, #tpu.memory_space<vmem>>, %arg4: memref<1x1x16x4xf32, #tpu.memory_space<vmem>>, %arg5: memref<1x4x8xf32, #tpu.memory_space<vmem>>, %arg6: memref<1x9x8xf32, #tpu.memory_space<vmem>>, %arg7: memref<1x8x4xf32, #tpu.memory_space<vmem>>, %arg8: memref<1x8xf32, #tpu.memory_space<vmem>>, %arg9: memref<1x8xf32, #tpu.memory_space<vmem>>, %arg10: memref<1x4xf32, #tpu.memory_space<vmem>>, %arg11: memref<1x128x4xf32, #tpu.memory_space<vmem>>) attributes {dimension_semantics = [#tpu.dimension_semantics<parallel>, #tpu.dimension_semantics<parallel>], iteration_bounds = array<i64: 2, 2>, scalar_prefetch = 0 : i64, scratch_operands = 0 : i64, tpu.core_type = #tpu.core_type<tc>, window_params = [{transform_indices = @transform_0, window_bounds = array<i64: 1, 8, 16, 4>}, {transform_indices = @transform_1, window_bounds = array<i64: 1, 1, 16, 4>}, {transform_indices = @transform_2, window_bounds = array<i64: 1, 1, 16, 4>}, {transform_indices = @transform_3, window_bounds = array<i64: 1, 4, 8>}, {transform_indices = @transform_4, window_bounds = array<i64: 1, 9, 8>}, {transform_indices = @transform_5, window_bounds = array<i64: 1, 8, 4>}, {pipeline_mode = #tpu.pipeline_mode<synchronous>, transform_indices = @transform_6, window_bounds = array<i64: 1, 8>}, {pipeline_mode = #tpu.pipeline_mode<synchronous>, transform_indices = @transform_7, window_bounds = array<i64: 1, 8>}, {pipeline_mode = #tpu.pipeline_mode<synchronous>, transform_indices = @transform_8, window_bounds = array<i64: 1, 4>}, {transform_indices = @transform_9, window_bounds = array<i64: 1, 128, 4>}]} {
    %c0 = arith.constant 0 : index
    %c0_0 = arith.constant 0 : index
    %c0_1 = arith.constant 0 : index
    %c0_2 = arith.constant 0 : index
    %0 = vector.load %arg2[%c0, %c0_0, %c0_1, %c0_2] : memref<1x8x16x4xf32, #tpu.memory_space<vmem>>, vector<1x8x16x4xf32>
    %1 = vector.shape_cast %0 : vector<1x8x16x4xf32> to vector<8x16x4xf32>
    %c0_3 = arith.constant 0 : index
    %c0_4 = arith.constant 0 : index
    %c0_5 = arith.constant 0 : index
    %c0_6 = arith.constant 0 : index
    %2 = vector.load %arg3[%c0_3, %c0_4, %c0_5, %c0_6] : memref<1x1x16x4xf32, #tpu.memory_space<vmem>>, vector<1x1x16x4xf32>
    %3 = vector.shape_cast %2 : vector<1x1x16x4xf32> to vector<1x16x4xf32>
    %c0_7 = arith.constant 0 : index
    %c0_8 = arith.constant 0 : index
    %c0_9 = arith.constant 0 : index
    %c0_10 = arith.constant 0 : index
    %4 = vector.load %arg4[%c0_7, %c0_8, %c0_9, %c0_10] : memref<1x1x16x4xf32, #tpu.memory_space<vmem>>, vector<1x1x16x4xf32>
    %5 = vector.shape_cast %4 : vector<1x1x16x4xf32> to vector<1x16x4xf32>
    %6 = tpu.concatenate %3, %1, %5 in 0 : vector<1x16x4xf32>, vector<8x16x4xf32>, vector<1x16x4xf32> -> vector<10x16x4xf32>
    %7 = vector.shape_cast %6 : vector<10x16x4xf32> to vector<160x4xf32>
    %c0_11 = arith.constant 0 : index
    %c0_12 = arith.constant 0 : index
    %c0_13 = arith.constant 0 : index
    %8 = vector.load %arg5[%c0_11, %c0_12, %c0_13] : memref<1x4x8xf32, #tpu.memory_space<vmem>>, vector<1x4x8xf32>
    %9 = vector.shape_cast %8 : vector<1x4x8xf32> to vector<4x8xf32>
    %cst = arith.constant dense<0.000000e+00> : vector<160x8xf32>
    %10 = tpu.matmul %7, %9, %cst {dimension_numbers = #tpu.dot_dimension_numbers<[1], [0], [0], [1], [0, 0, 1, 1], [], []>} : vector<160x4xf32>, vector<4x8xf32>, vector<160x8xf32> -> vector<160x8xf32>
    %c0_14 = arith.constant 0 : index
    %c0_15 = arith.constant 0 : index
    %11 = vector.load %arg8[%c0_14, %c0_15] : memref<1x8xf32, #tpu.memory_space<vmem>>, vector<1x8xf32>
    %12 = vector.broadcast %11 : vector<1x8xf32> to vector<160x8xf32>
    %13 = arith.addf %10, %12 : vector<160x8xf32>
    %cst_16 = arith.constant 0.000000e+00 : f32
    %14 = vector.broadcast %cst_16 : f32 to vector<160x8xf32>
    %15 = arith.maximumf %13, %14 : vector<160x8xf32>
    %16 = vector.shape_cast %15 : vector<160x8xf32> to vector<10x16x8xf32>
    %17 = tpu.iota {dimensions = array<i32: 0>} : vector<10x1x1xi32>
    %c8_i32 = arith.constant 8 : i32
    %18 = arith.muli %arg1, %c8_i32 : i32
    %19 = vector.broadcast %18 : i32 to vector<10x1x1xi32>
    %20 = arith.addi %19, %17 : vector<10x1x1xi32>
    %c1_i32 = arith.constant 1 : i32
    %21 = vector.broadcast %c1_i32 : i32 to vector<10x1x1xi32>
    %22 = arith.subi %20, %21 : vector<10x1x1xi32>
    %c0_i32 = arith.constant 0 : i32
    %23 = vector.broadcast %c0_i32 : i32 to vector<10x1x1xi32>
    %24 = arith.cmpi sge, %22, %23 : vector<10x1x1xi32>
    %c16_i32 = arith.constant 16 : i32
    %25 = vector.broadcast %c16_i32 : i32 to vector<10x1x1xi32>
    %26 = arith.cmpi slt, %22, %25 : vector<10x1x1xi32>
    %27 = arith.andi %24, %26 : vector<10x1x1xi1>
    %cst_17 = arith.constant 0.000000e+00 : f32
    %28 = vector.shape_cast %27 : vector<10x1x1xi1> to vector<10x1x1xi1>
    %29 = vector.broadcast %28 : vector<10x1x1xi1> to vector<10x16x8xi1>
    %30 = vector.broadcast %cst_17 : f32 to vector<10x16x8xf32>
    %31 = arith.select %29, %16, %30 : vector<10x16x8xi1>, vector<10x16x8xf32>
    %c0_18 = arith.constant 0 : index
    %c0_19 = arith.constant 0 : index
    %c0_20 = arith.constant 0 : index
    %32 = vector.load %arg6[%c0_18, %c0_19, %c0_20] : memref<1x9x8xf32, #tpu.memory_space<vmem>>, vector<1x9x8xf32>
    %33 = vector.shape_cast %32 : vector<1x9x8xf32> to vector<9x8xf32>
    %34 = tpu.iota {dimensions = array<i32: 1>} : vector<1x16x1xi32>
    %cst_21 = arith.constant 0.000000e+00 : f32
    %35 = vector.broadcast %cst_21 : f32 to vector<8x16x8xf32>
    %c1_i32_22 = arith.constant 1 : i32
    %36 = tpu.dynamic_rotate %31 by %c1_i32_22 dim 1 : vector<10x16x8xf32>, i32 -> vector<10x16x8xf32>
    %c1_i32_23 = arith.constant 1 : i32
    %37 = vector.broadcast %c1_i32_23 : i32 to vector<1x16x1xi32>
    %38 = arith.cmpi sge, %34, %37 : vector<1x16x1xi32>
    %cst_24 = arith.constant 0.000000e+00 : f32
    %39 = vector.shape_cast %38 : vector<1x16x1xi1> to vector<1x16x1xi1>
    %40 = vector.broadcast %39 : vector<1x16x1xi1> to vector<10x16x8xi1>
    %41 = vector.broadcast %cst_24 : f32 to vector<10x16x8xf32>
    %42 = arith.select %40, %36, %41 : vector<10x16x8xi1>, vector<10x16x8xf32>
    %43 = vector.extract_strided_slice %42 {offsets = [0, 0, 0], sizes = [8, 16, 8], strides = [1, 1, 1]} : vector<10x16x8xf32> to vector<8x16x8xf32>
    %44 = vector.extract_strided_slice %33 {offsets = [0, 0], sizes = [1, 8], strides = [1, 1]} : vector<9x8xf32> to vector<1x8xf32>
    %45 = vector.shape_cast %44 : vector<1x8xf32> to vector<1x1x8xf32>
    %46 = vector.broadcast %45 : vector<1x1x8xf32> to vector<8x16x8xf32>
    %47 = arith.mulf %43, %46 : vector<8x16x8xf32>
    %48 = arith.addf %35, %47 : vector<8x16x8xf32>
    %49 = vector.extract_strided_slice %42 {offsets = [1, 0, 0], sizes = [8, 16, 8], strides = [1, 1, 1]} : vector<10x16x8xf32> to vector<8x16x8xf32>
    %50 = vector.extract_strided_slice %33 {offsets = [3, 0], sizes = [1, 8], strides = [1, 1]} : vector<9x8xf32> to vector<1x8xf32>
    %51 = vector.shape_cast %50 : vector<1x8xf32> to vector<1x1x8xf32>
    %52 = vector.broadcast %51 : vector<1x1x8xf32> to vector<8x16x8xf32>
    %53 = arith.mulf %49, %52 : vector<8x16x8xf32>
    %54 = arith.addf %48, %53 : vector<8x16x8xf32>
    %55 = vector.extract_strided_slice %42 {offsets = [2, 0, 0], sizes = [8, 16, 8], strides = [1, 1, 1]} : vector<10x16x8xf32> to vector<8x16x8xf32>
    %56 = vector.extract_strided_slice %33 {offsets = [6, 0], sizes = [1, 8], strides = [1, 1]} : vector<9x8xf32> to vector<1x8xf32>
    %57 = vector.shape_cast %56 : vector<1x8xf32> to vector<1x1x8xf32>
    %58 = vector.broadcast %57 : vector<1x1x8xf32> to vector<8x16x8xf32>
    %59 = arith.mulf %55, %58 : vector<8x16x8xf32>
    %60 = arith.addf %54, %59 : vector<8x16x8xf32>
    %61 = vector.extract_strided_slice %31 {offsets = [0, 0, 0], sizes = [8, 16, 8], strides = [1, 1, 1]} : vector<10x16x8xf32> to vector<8x16x8xf32>
    %62 = vector.extract_strided_slice %33 {offsets = [1, 0], sizes = [1, 8], strides = [1, 1]} : vector<9x8xf32> to vector<1x8xf32>
    %63 = vector.shape_cast %62 : vector<1x8xf32> to vector<1x1x8xf32>
    %64 = vector.broadcast %63 : vector<1x1x8xf32> to vector<8x16x8xf32>
    %65 = arith.mulf %61, %64 : vector<8x16x8xf32>
    %66 = arith.addf %60, %65 : vector<8x16x8xf32>
    %67 = vector.extract_strided_slice %31 {offsets = [1, 0, 0], sizes = [8, 16, 8], strides = [1, 1, 1]} : vector<10x16x8xf32> to vector<8x16x8xf32>
    %68 = vector.extract_strided_slice %33 {offsets = [4, 0], sizes = [1, 8], strides = [1, 1]} : vector<9x8xf32> to vector<1x8xf32>
    %69 = vector.shape_cast %68 : vector<1x8xf32> to vector<1x1x8xf32>
    %70 = vector.broadcast %69 : vector<1x1x8xf32> to vector<8x16x8xf32>
    %71 = arith.mulf %67, %70 : vector<8x16x8xf32>
    %72 = arith.addf %66, %71 : vector<8x16x8xf32>
    %73 = vector.extract_strided_slice %31 {offsets = [2, 0, 0], sizes = [8, 16, 8], strides = [1, 1, 1]} : vector<10x16x8xf32> to vector<8x16x8xf32>
    %74 = vector.extract_strided_slice %33 {offsets = [7, 0], sizes = [1, 8], strides = [1, 1]} : vector<9x8xf32> to vector<1x8xf32>
    %75 = vector.shape_cast %74 : vector<1x8xf32> to vector<1x1x8xf32>
    %76 = vector.broadcast %75 : vector<1x1x8xf32> to vector<8x16x8xf32>
    %77 = arith.mulf %73, %76 : vector<8x16x8xf32>
    %78 = arith.addf %72, %77 : vector<8x16x8xf32>
    %c15_i32 = arith.constant 15 : i32
    %79 = tpu.dynamic_rotate %31 by %c15_i32 dim 1 : vector<10x16x8xf32>, i32 -> vector<10x16x8xf32>
    %c15_i32_25 = arith.constant 15 : i32
    %80 = vector.broadcast %c15_i32_25 : i32 to vector<1x16x1xi32>
    %81 = arith.cmpi slt, %34, %80 : vector<1x16x1xi32>
    %cst_26 = arith.constant 0.000000e+00 : f32
    %82 = vector.shape_cast %81 : vector<1x16x1xi1> to vector<1x16x1xi1>
    %83 = vector.broadcast %82 : vector<1x16x1xi1> to vector<10x16x8xi1>
    %84 = vector.broadcast %cst_26 : f32 to vector<10x16x8xf32>
    %85 = arith.select %83, %79, %84 : vector<10x16x8xi1>, vector<10x16x8xf32>
    %86 = vector.extract_strided_slice %85 {offsets = [0, 0, 0], sizes = [8, 16, 8], strides = [1, 1, 1]} : vector<10x16x8xf32> to vector<8x16x8xf32>
    %87 = vector.extract_strided_slice %33 {offsets = [2, 0], sizes = [1, 8], strides = [1, 1]} : vector<9x8xf32> to vector<1x8xf32>
    %88 = vector.shape_cast %87 : vector<1x8xf32> to vector<1x1x8xf32>
    %89 = vector.broadcast %88 : vector<1x1x8xf32> to vector<8x16x8xf32>
    %90 = arith.mulf %86, %89 : vector<8x16x8xf32>
    %91 = arith.addf %78, %90 : vector<8x16x8xf32>
    %92 = vector.extract_strided_slice %85 {offsets = [1, 0, 0], sizes = [8, 16, 8], strides = [1, 1, 1]} : vector<10x16x8xf32> to vector<8x16x8xf32>
    %93 = vector.extract_strided_slice %33 {offsets = [5, 0], sizes = [1, 8], strides = [1, 1]} : vector<9x8xf32> to vector<1x8xf32>
    %94 = vector.shape_cast %93 : vector<1x8xf32> to vector<1x1x8xf32>
    %95 = vector.broadcast %94 : vector<1x1x8xf32> to vector<8x16x8xf32>
    %96 = arith.mulf %92, %95 : vector<8x16x8xf32>
    %97 = arith.addf %91, %96 : vector<8x16x8xf32>
    %98 = vector.extract_strided_slice %85 {offsets = [2, 0, 0], sizes = [8, 16, 8], strides = [1, 1, 1]} : vector<10x16x8xf32> to vector<8x16x8xf32>
    %99 = vector.extract_strided_slice %33 {offsets = [8, 0], sizes = [1, 8], strides = [1, 1]} : vector<9x8xf32> to vector<1x8xf32>
    %100 = vector.shape_cast %99 : vector<1x8xf32> to vector<1x1x8xf32>
    %101 = vector.broadcast %100 : vector<1x1x8xf32> to vector<8x16x8xf32>
    %102 = arith.mulf %98, %101 : vector<8x16x8xf32>
    %103 = arith.addf %97, %102 : vector<8x16x8xf32>
    %c0_27 = arith.constant 0 : index
    %c0_28 = arith.constant 0 : index
    %104 = vector.load %arg9[%c0_27, %c0_28] : memref<1x8xf32, #tpu.memory_space<vmem>>, vector<1x8xf32>
    %105 = vector.shape_cast %104 : vector<1x8xf32> to vector<1x1x8xf32>
    %106 = vector.broadcast %105 : vector<1x1x8xf32> to vector<8x16x8xf32>
    %107 = arith.addf %103, %106 : vector<8x16x8xf32>
    %cst_29 = arith.constant 0.000000e+00 : f32
    %108 = vector.broadcast %cst_29 : f32 to vector<8x16x8xf32>
    %109 = arith.maximumf %107, %108 : vector<8x16x8xf32>
    %110 = vector.shape_cast %109 : vector<8x16x8xf32> to vector<128x8xf32>
    %c0_30 = arith.constant 0 : index
    %c0_31 = arith.constant 0 : index
    %c0_32 = arith.constant 0 : index
    %111 = vector.load %arg7[%c0_30, %c0_31, %c0_32] : memref<1x8x4xf32, #tpu.memory_space<vmem>>, vector<1x8x4xf32>
    %112 = vector.shape_cast %111 : vector<1x8x4xf32> to vector<8x4xf32>
    %cst_33 = arith.constant dense<0.000000e+00> : vector<128x4xf32>
    %113 = tpu.matmul %110, %112, %cst_33 {dimension_numbers = #tpu.dot_dimension_numbers<[1], [0], [0], [1], [0, 0, 1, 1], [], []>} : vector<128x8xf32>, vector<8x4xf32>, vector<128x4xf32> -> vector<128x4xf32>
    %c0_34 = arith.constant 0 : index
    %c0_35 = arith.constant 0 : index
    %114 = vector.load %arg10[%c0_34, %c0_35] : memref<1x4xf32, #tpu.memory_space<vmem>>, vector<1x4xf32>
    %115 = vector.broadcast %114 : vector<1x4xf32> to vector<128x4xf32>
    %116 = arith.addf %113, %115 : vector<128x4xf32>
    %117 = vector.shape_cast %1 : vector<8x16x4xf32> to vector<128x4xf32>
    %118 = arith.addf %116, %117 : vector<128x4xf32>
    %c0_36 = arith.constant 0 : index
    %c0_37 = arith.constant 0 : index
    %c0_38 = arith.constant 0 : index
    %119 = vector.load %arg11[%c0_36, %c0_37, %c0_38] : memref<1x128x4xf32, #tpu.memory_space<vmem>>, vector<1x128x4xf32>
    %120 = vector.shape_cast %119 : vector<1x128x4xf32> to vector<128x4xf32>
    %121 = vector.shape_cast %118 : vector<128x4xf32> to vector<1x128x4xf32>
    tpu.vector_store %arg11[%c0_36, %c0_37, %c0_38], %121 {strides = array<i32>} : memref<1x128x4xf32, #tpu.memory_space<vmem>>, vector<1x128x4xf32>,
    return
  }
  func.func @transform_0(%arg0: i32, %arg1: i32) -> (i32, i32, i32, i32) {
    %c0_i32 = arith.constant 0 : i32
    %c0_i32_0 = arith.constant 0 : i32
    %c0_i32_1 = arith.constant 0 : i32
    return %arg0, %arg1, %c0_i32, %c0_i32_0 : i32, i32, i32, i32
  }
  func.func @transform_1(%arg0: i32, %arg1: i32) -> (i32, i32, i32, i32) {
    %c8_i32 = arith.constant 8 : i32
    %0 = arith.muli %arg1, %c8_i32 : i32
    %c1_i32 = arith.constant 1 : i32
    %1 = arith.subi %0, %c1_i32 : i32
    %c0_i32 = arith.constant 0 : i32
    %2 = arith.maxsi %1, %c0_i32 : i32
    %c0_i32_0 = arith.constant 0 : i32
    %c0_i32_1 = arith.constant 0 : i32
    %c0_i32_2 = arith.constant 0 : i32
    return %arg0, %2, %c0_i32_0, %c0_i32_1 : i32, i32, i32, i32
  }
  func.func @transform_2(%arg0: i32, %arg1: i32) -> (i32, i32, i32, i32) {
    %c8_i32 = arith.constant 8 : i32
    %0 = arith.muli %arg1, %c8_i32 : i32
    %c8_i32_0 = arith.constant 8 : i32
    %1 = arith.addi %0, %c8_i32_0 : i32
    %c15_i32 = arith.constant 15 : i32
    %2 = arith.minsi %1, %c15_i32 : i32
    %c0_i32 = arith.constant 0 : i32
    %c0_i32_1 = arith.constant 0 : i32
    %c0_i32_2 = arith.constant 0 : i32
    return %arg0, %2, %c0_i32, %c0_i32_1 : i32, i32, i32, i32
  }
  func.func @transform_3(%arg0: i32, %arg1: i32) -> (i32, i32, i32) {
    %c0_i32 = arith.constant 0 : i32
    %c0_i32_0 = arith.constant 0 : i32
    %c0_i32_1 = arith.constant 0 : i32
    return %arg0, %c0_i32, %c0_i32_0 : i32, i32, i32
  }
  func.func @transform_4(%arg0: i32, %arg1: i32) -> (i32, i32, i32) {
    %c0_i32 = arith.constant 0 : i32
    %c0_i32_0 = arith.constant 0 : i32
    %c0_i32_1 = arith.constant 0 : i32
    return %arg0, %c0_i32, %c0_i32_0 : i32, i32, i32
  }
  func.func @transform_5(%arg0: i32, %arg1: i32) -> (i32, i32, i32) {
    %c0_i32 = arith.constant 0 : i32
    %c0_i32_0 = arith.constant 0 : i32
    %c0_i32_1 = arith.constant 0 : i32
    return %arg0, %c0_i32, %c0_i32_0 : i32, i32, i32
  }
  func.func @transform_6(%arg0: i32, %arg1: i32) -> (i32, i32) {
    %c0_i32 = arith.constant 0 : i32
    %c0_i32_0 = arith.constant 0 : i32
    %c0_i32_1 = arith.constant 0 : i32
    return %c0_i32, %c0_i32_0 : i32, i32
  }
  func.func @transform_7(%arg0: i32, %arg1: i32) -> (i32, i32) {
    %c0_i32 = arith.constant 0 : i32
    %c0_i32_0 = arith.constant 0 : i32
    %c0_i32_1 = arith.constant 0 : i32
    return %c0_i32, %c0_i32_0 : i32, i32
  }
  func.func @transform_8(%arg0: i32, %arg1: i32) -> (i32, i32) {
    %c0_i32 = arith.constant 0 : i32
    %c0_i32_0 = arith.constant 0 : i32
    %c0_i32_1 = arith.constant 0 : i32
    return %c0_i32, %c0_i32_0 : i32, i32
  }
  func.func @transform_9(%arg0: i32, %arg1: i32) -> (i32, i32, i32) {
    %c0_i32 = arith.constant 0 : i32
    %c0_i32_0 = arith.constant 0 : i32
    return %arg0, %arg1, %c0_i32 : i32, i32, i32
  }
}

</mosaic_0001>

<llo_original>
// kernel: cond_conv_residual_forward.1
$region0: #{cond_conv_residual_forward.1}
  #allocation0 [shape = 'u32[]', space=smem, size = 0x4, offset = 0x4, fixed_abs, tag = 'smem constant byte address 0x4 - core index']
  #allocation1 [shape = 'u32[144,128]{1,0:T(1,128)}', space=vmem, size = 0x12000, scoped, tag = 'internal scratch']
  %s0 = inlined_call_operand.vmem [shape: f32[2,16,16,4], index: 0, kind: input, shape index: {}, may-alias: {0,1,2}]
  %s1 = inlined_call_operand.vmem [shape: f32[2,16,16,4], index: 1, kind: input, shape index: {}, may-alias: {0,1,2}]
  %s2 = inlined_call_operand.vmem [shape: f32[2,16,16,4], index: 2, kind: input, shape index: {}, may-alias: {0,1,2}]
  %s3 = inlined_call_operand.vmem [shape: f32[2,4,8], index: 3, kind: input, shape index: {}]
  %s4 = inlined_call_operand.vmem [shape: f32[2,9,8], index: 4, kind: input, shape index: {}]
  %s5 = inlined_call_operand.vmem [shape: f32[2,8,4], index: 5, kind: input, shape index: {}]
  %s6 = inlined_call_operand.vmem [shape: f32[1,8], index: 6, kind: input, shape index: {}]
  %s7 = inlined_call_operand.vmem [shape: f32[1,8], index: 7, kind: input, shape index: {}]
  %s8 = inlined_call_operand.vmem [shape: f32[1,4], index: 8, kind: input, shape index: {}]
  %s9 = inlined_call_operand.vmem [shape: f32[2,256,4], index: 9, kind: output, shape index: {}]
  %s10 = sld [smem:[#allocation0]]
  $region69: #{cond_conv_residual_forward.1} parent=0
    _
  %s12 = ssub.s32 1, %s10
  %s13 = scalar_select 0, %s12, %s10
  loop: start=0, step=1, limit=6
  $region2: #{cond_conv_residual_forward.1} parent=0 // loop_pre_header
    _
  $region3: #{cond_conv_residual_forward.1} parent=0 // loop_header
    %s15 = sphi 0, %s19
    %p16 = scmp.ge.s32.totalorder %s15, 6
    %s22 = sphi 0, %s34
    %s23 = sphi 0, %s30
    %s24 = sphi 0, %s22
    %s25 = sphi 0, %s23
    %s26 = sphi 0, %s24
    %s27 = sphi 0, %s25
    %s39 = sphi 0, %s41
    %s42 = sphi 0, %s39
    %s43 = sphi 0, %s42
    %s59 = sphi 0, %s43
    %s75 = sphi 0, %s77
    %s78 = sphi 0, %s75
    %s79 = sphi 0, %s78
    %s95 = sphi 0, %s79
    %s111 = sphi 0, %s113
    %s114 = sphi 0, %s111
    %s115 = sphi 0, %s114
    %s131 = sphi 0, %s115
    %s137 = sphi 0, %s139
    %s140 = sphi 0, %s137
    %s141 = sphi 0, %s140
    %s157 = sphi 0, %s141
    %s163 = sphi 0, %s165
    %s166 = sphi 0, %s163
    %s167 = sphi 0, %s166
    %s183 = sphi 0, %s167
    %s189 = sphi 0, %s191
    %s192 = sphi 0, %s189
    %s193 = sphi 0, %s192
    %s209 = sphi 0, %s193
    %s213 = sphi 0, %s213
    %s215 = sphi 0, %s213
    %s216 = sphi 0, %s215
    %s230 = sphi 0, %s216
    %s234 = sphi 0, %s234
    %s236 = sphi 0, %s234
    %s237 = sphi 0, %s236
    %s251 = sphi 0, %s237
    %s255 = sphi 0, %s255
    %s257 = sphi 0, %s255
    %s258 = sphi 0, %s257
    %s272 = sphi 0, %s258
    %s280 = sphi 0, %s282
    %s283 = sphi 0, %s280
    %s284 = sphi 0, %s283
    %s300 = sphi 0, %s284
  $region4: #{cond_conv_residual_forward.1} parent=0 // loop_header_branch
    %18 = sbr.rel (%p16) target = $region8
  $region5: #{cond_conv_residual_forward.1} parent=0 // loop_body
    %s20 = ssub.s32 %s15, 1
    %s21 = ssub.s32 %s15, 2
    %s28 = sadd.s32 1, %s23
    %p29 = scmp.ge.s32.totalorder %s28, 2
    %s30 = scalar_select %p29, 0, %s28
    %s31 = sadd.s32 1, %s22
    %s32 = scalar_select %p29, %s31, %s22
    %p33 = scmp.ge.s32.totalorder %s32, 2
    %s34 = scalar_select %p33, 0, %s32
    %s35 = ssub.s32 %s22, %s34
    %s36 = ssub.s32 %s23, %s30
    %s37 = sor.u32 %s35, %s36
    %p38 = scmp.eq.s32.totalorder %s37, 0
    %s40 = sadd.s32 %s39, 1
    %s41 = scalar_select %p38, %s39, %s40
    %p44 = pneg %p38
    %p45 = scmp.eq.s32.totalorder %s15, 3
    %p46 = por %p44, %p45
    %p47 = scmp.ne.s32.totalorder %s39, %s42
    %p48 = scmp.eq.s32.totalorder %s15, 0
    %p49 = por %p47, %p48
    %p50 = scmp.ne.s32.totalorder %s39, %s42
    %p51 = scmp.eq.s32.totalorder %s20, 3
    %p52 = por %p50, %p51
    %p53 = scmp.ne.s32.totalorder %s42, %s43
    %p54 = scmp.eq.s32.totalorder %s20, 0
    %p55 = por %p53, %p54
    %p56 = scmp.ne.s32.totalorder %s42, %s43
    %p57 = scmp.eq.s32.totalorder %s21, 3
    %p58 = por %p56, %p57
    %p60 = scmp.ne.s32.totalorder %s43, %s59
    %p61 = scmp.eq.s32.totalorder %s21, 0
    %p62 = por %p60, %p61
    %s63 = smul.u32 %s23, 8
    %s64 = ssub.s32 %s63, 1
    %p65 = scmp.gt.s32.totalorder %s64, 0
    %s66 = scalar_select %p65, %s64, 0
    %s67 = smul.u32 %s30, 8
    %s68 = ssub.s32 %s67, 1
    %p69 = scmp.gt.s32.totalorder %s68, 0
    %s70 = scalar_select %p69, %s68, 0
    %s71 = ssub.s32 %s22, %s34
    %s72 = ssub.s32 %s66, %s70
    %s73 = sor.u32 %s71, %s72
    %p74 = scmp.eq.s32.totalorder %s73, 0
    %s76 = sadd.s32 %s75, 1
    %s77 = scalar_select %p74, %s75, %s76
    %p80 = pneg %p74
    %p81 = scmp.eq.s32.totalorder %s15, 3
    %p82 = por %p80, %p81
    %p83 = scmp.ne.s32.totalorder %s75, %s78
    %p84 = scmp.eq.s32.totalorder %s15, 0
    %p85 = por %p83, %p84
    %p86 = scmp.ne.s32.totalorder %s75, %s78
    %p87 = scmp.eq.s32.totalorder %s20, 3
    %p88 = por %p86, %p87
    %p89 = scmp.ne.s32.totalorder %s78, %s79
    %p90 = scmp.eq.s32.totalorder %s20, 0
    %p91 = por %p89, %p90
    %p92 = scmp.ne.s32.totalorder %s78, %s79
    %p93 = scmp.eq.s32.totalorder %s21, 3
    %p94 = por %p92, %p93
    %p96 = scmp.ne.s32.totalorder %s79, %s95
    %p97 = scmp.eq.s32.totalorder %s21, 0
    %p98 = por %p96, %p97
    %s99 = smul.u32 %s23, 8
    %s100 = sadd.s32 %s99, 8
    %p101 = scmp.lt.s32.totalorder %s100, 15
    %s102 = scalar_select %p101, %s100, 15
    %s103 = smul.u32 %s30, 8
    %s104 = sadd.s32 %s103, 8
    %p105 = scmp.lt.s32.totalorder %s104, 15
    %s106 = scalar_select %p105, %s104, 15
    %s107 = ssub.s32 %s22, %s34
    %s108 = ssub.s32 %s102, %s106
    %s109 = sor.u32 %s107, %s108
    %p110 = scmp.eq.s32.totalorder %s109, 0
    %s112 = sadd.s32 %s111, 1
    %s113 = scalar_select %p110, %s111, %s112
    %p116 = pneg %p110
    %p117 = scmp.eq.s32.totalorder %s15, 3
    %p118 = por %p116, %p117
    %p119 = scmp.ne.s32.totalorder %s111, %s114
    %p120 = scmp.eq.s32.totalorder %s15, 0
    %p121 = por %p119, %p120
    %p122 = scmp.ne.s32.totalorder %s111, %s114
    %p123 = scmp.eq.s32.totalorder %s20, 3
    %p124 = por %p122, %p123
    %p125 = scmp.ne.s32.totalorder %s114, %s115
    %p126 = scmp.eq.s32.totalorder %s20, 0
    %p127 = por %p125, %p126
    %p128 = scmp.ne.s32.totalorder %s114, %s115
    %p129 = scmp.eq.s32.totalorder %s21, 3
    %p130 = por %p128, %p129
    %p132 = scmp.ne.s32.totalorder %s115, %s131
    %p133 = scmp.eq.s32.totalorder %s21, 0
    %p134 = por %p132, %p133
    %s135 = ssub.s32 %s22, %s34
    %p136 = scmp.eq.s32.totalorder %s135, 0
    %s138 = sadd.s32 %s137, 1
    %s139 = scalar_select %p136, %s137, %s138
    %p142 = pneg %p136
    %p143 = scmp.eq.s32.totalorder %s15, 3
    %p144 = por %p142, %p143
    %p145 = scmp.ne.s32.totalorder %s137, %s140
    %p146 = scmp.eq.s32.totalorder %s15, 0
    %p147 = por %p145, %p146
    %p148 = scmp.ne.s32.totalorder %s137, %s140
    %p149 = scmp.eq.s32.totalorder %s20, 3
    %p150 = por %p148, %p149
    %p151 = scmp.ne.s32.totalorder %s140, %s141
    %p152 = scmp.eq.s32.totalorder %s20, 0
    %p153 = por %p151, %p152
    %p154 = scmp.ne.s32.totalorder %s140, %s141
    %p155 = scmp.eq.s32.totalorder %s21, 3
    %p156 = por %p154, %p155
    %p158 = scmp.ne.s32.totalorder %s141, %s157
    %p159 = scmp.eq.s32.totalorder %s21, 0
    %p160 = por %p158, %p159
    %s161 = ssub.s32 %s22, %s34
    %p162 = scmp.eq.s32.totalorder %s161, 0
    %s164 = sadd.s32 %s163, 1
    %s165 = scalar_select %p162, %s163, %s164
    %p168 = pneg %p162
    %p169 = scmp.eq.s32.totalorder %s15, 3
    %p170 = por %p168, %p169
    %p171 = scmp.ne.s32.totalorder %s163, %s166
    %p172 = scmp.eq.s32.totalorder %s15, 0
    %p173 = por %p171, %p172
    %p174 = scmp.ne.s32.totalorder %s163, %s166
    %p175 = scmp.eq.s32.totalorder %s20, 3
    %p176 = por %p174, %p175
    %p177 = scmp.ne.s32.totalorder %s166, %s167
    %p178 = scmp.eq.s32.totalorder %s20, 0
    %p179 = por %p177, %p178
    %p180 = scmp.ne.s32.totalorder %s166, %s167
    %p181 = scmp.eq.s32.totalorder %s21, 3
    %p182 = por %p180, %p181
    %p184 = scmp.ne.s32.totalorder %s167, %s183
    %p185 = scmp.eq.s32.totalorder %s21, 0
    %p186 = por %p184, %p185
    %s187 = ssub.s32 %s22, %s34
    %p188 = scmp.eq.s32.totalorder %s187, 0
    %s190 = sadd.s32 %s189, 1
    %s191 = scalar_select %p188, %s189, %s190
    %p194 = pneg %p188
    %p195 = scmp.eq.s32.totalorder %s15, 3
    %p196 = por %p194, %p195
    %p197 = scmp.ne.s32.totalorder %s189, %s192
    %p198 = scmp.eq.s32.totalorder %s15, 0
    %p199 = por %p197, %p198
    %p200 = scmp.ne.s32.totalorder %s189, %s192
    %p201 = scmp.eq.s32.totalorder %s20, 3
    %p202 = por %p200, %p201
    %p203 = scmp.ne.s32.totalorder %s192, %s193
    %p204 = scmp.eq.s32.totalorder %s20, 0
    %p205 = por %p203, %p204
    %p206 = scmp.ne.s32.totalorder %s192, %s193
    %p207 = scmp.eq.s32.totalorder %s21, 3
    %p208 = por %p206, %p207
    %p210 = scmp.ne.s32.totalorder %s193, %s209
    %p211 = scmp.eq.s32.totalorder %s21, 0
    %p212 = por %p210, %p211
    %s214 = sadd.s32 %s213, 1
    %p217 = scmp.eq.s32.totalorder %s15, 3
    %p218 = scmp.ne.s32.totalorder %s213, %s215
    %p219 = scmp.eq.s32.totalorder %s15, 0
    %p220 = por %p218, %p219
    %p221 = scmp.ne.s32.totalorder %s213, %s215
    %p222 = scmp.eq.s32.totalorder %s20, 3
    %p223 = por %p221, %p222
    %p224 = scmp.ne.s32.totalorder %s215, %s216
    %p225 = scmp.eq.s32.totalorder %s20, 0
    %p226 = por %p224, %p225
    %p227 = scmp.ne.s32.totalorder %s215, %s216
    %p228 = scmp.eq.s32.totalorder %s21, 3
    %p229 = por %p227, %p228
    %p231 = scmp.ne.s32.totalorder %s216, %s230
    %p232 = scmp.eq.s32.totalorder %s21, 0
    %p233 = por %p231, %p232
    %s235 = sadd.s32 %s234, 1
    %p238 = scmp.eq.s32.totalorder %s15, 3
    %p239 = scmp.ne.s32.totalorder %s234, %s236
    %p240 = scmp.eq.s32.totalorder %s15, 0
    %p241 = por %p239, %p240
    %p242 = scmp.ne.s32.totalorder %s234, %s236
    %p243 = scmp.eq.s32.totalorder %s20, 3
    %p244 = por %p242, %p243
    %p245 = scmp.ne.s32.totalorder %s236, %s237
    %p246 = scmp.eq.s32.totalorder %s20, 0
    %p247 = por %p245, %p246
    %p248 = scmp.ne.s32.totalorder %s236, %s237
    %p249 = scmp.eq.s32.totalorder %s21, 3
    %p250 = por %p248, %p249
    %p252 = scmp.ne.s32.totalorder %s237, %s251
    %p253 = scmp.eq.s32.totalorder %s21, 0
    %p254 = por %p252, %p253
    %s256 = sadd.s32 %s255, 1
    %p259 = scmp.eq.s32.totalorder %s15, 3
    %p260 = scmp.ne.s32.totalorder %s255, %s257
    %p261 = scmp.eq.s32.totalorder %s15, 0
    %p262 = por %p260, %p261
    %p263 = scmp.ne.s32.totalorder %s255, %s257
    %p264 = scmp.eq.s32.totalorder %s20, 3
    %p265 = por %p263, %p264
    %p266 = scmp.ne.s32.totalorder %s257, %s258
    %p267 = scmp.eq.s32.totalorder %s20, 0
    %p268 = por %p266, %p267
    %p269 = scmp.ne.s32.totalorder %s257, %s258
    %p270 = scmp.eq.s32.totalorder %s21, 3
    %p271 = por %p269, %p270
    %p273 = scmp.ne.s32.totalorder %s258, %s272
    %p274 = scmp.eq.s32.totalorder %s21, 0
    %p275 = por %p273, %p274
    %s276 = ssub.s32 %s22, %s34
    %s277 = ssub.s32 %s23, %s30
    %s278 = sor.u32 %s276, %s277
    %p279 = scmp.eq.s32.totalorder %s278, 0
    %s281 = sadd.s32 %s280, 1
    %s282 = scalar_select %p279, %s280, %s281
    %p285 = pneg %p279
    %p286 = scmp.eq.s32.totalorder %s15, 3
    %p287 = por %p285, %p286
    %p288 = scmp.ne.s32.totalorder %s280, %s283
    %p289 = scmp.eq.s32.totalorder %s15, 0
    %p290 = por %p288, %p289
    %p291 = scmp.ne.s32.totalorder %s280, %s283
    %p292 = scmp.eq.s32.totalorder %s20, 3
    %p293 = por %p291, %p292
    %p294 = scmp.ne.s32.totalorder %s283, %s284
    %p295 = scmp.eq.s32.totalorder %s20, 0
    %p296 = por %p294, %p295
    %p297 = scmp.ne.s32.totalorder %s283, %s284
    %p298 = scmp.eq.s32.totalorder %s21, 3
    %p299 = por %p297, %p298
    %p301 = scmp.ne.s32.totalorder %s284, %s300
    %p302 = scmp.eq.s32.totalorder %s21, 0
    %p303 = por %p301, %p302
    %p304 = scmp.le.s32.totalorder 1, %s15
    %p305 = scmp.lt.s32.totalorder %s15, 5
    %p306 = pnand %p304, %p305
    %p307 = pneg %p306
    // Predicated region
    $region9: #{cond_conv_residual_forward.1} parent=5 // pred_check
      _
    $region10: #{cond_conv_residual_forward.1} parent=5 // pred_check_branch
      %309 = sbr.rel (%p306) target = $region12
    $region11: #{cond_conv_residual_forward.1} parent=5 // pred_region
      %s310 = ssub.s32 %s15, 1
      // Predicated region
      $region13: #{cond_conv_residual_forward.1} parent=11 // pred_check
        %p311 = pneg %p226
      $region14: #{cond_conv_residual_forward.1} parent=11 // pred_check_branch
        %313 = sbr.rel (%p311) target = $region16
      $region15: #{cond_conv_residual_forward.1} parent=11 // pred_region
        _
      $region16: #{cond_conv_residual_forward.1} parent=11 // pred_fallthru
        _
      // Predicated region
      $region17: #{cond_conv_residual_forward.1} parent=11 // pred_check
        %p314 = pneg %p247
      $region18: #{cond_conv_residual_forward.1} parent=11 // pred_check_branch
        %316 = sbr.rel (%p314) target = $region20
      $region19: #{cond_conv_residual_forward.1} parent=11 // pred_region
        _
      $region20: #{cond_conv_residual_forward.1} parent=11 // pred_fallthru
        _
      // Predicated region
      $region21: #{cond_conv_residual_forward.1} parent=11 // pred_check
        %p317 = pneg %p268
      $region22: #{cond_conv_residual_forward.1} parent=11 // pred_check_branch
        %319 = sbr.rel (%p317) target = $region24
      $region23: #{cond_conv_residual_forward.1} parent=11 // pred_region
        _
      $region24: #{cond_conv_residual_forward.1} parent=11 // pred_fallthru
        _
    $region12: #{cond_conv_residual_forward.1} parent=5 // pred_fallthru
      _
    %p320 = scmp.lt.s32.totalorder %s15, 4
    // Predicated region
    $region25: #{cond_conv_residual_forward.1} parent=5 // pred_check
      %p321 = pneg %p320
    $region26: #{cond_conv_residual_forward.1} parent=5 // pred_check_branch
      %323 = sbr.rel (%p321) target = $region28
    $region27: #{cond_conv_residual_forward.1} parent=5 // pred_region
      // Predicated region
      $region29: #{cond_conv_residual_forward.1} parent=27 // pred_check
        %p324 = pneg %p49
      $region30: #{cond_conv_residual_forward.1} parent=27 // pred_check_branch
        %326 = sbr.rel (%p324) target = $region32
      $region31: #{cond_conv_residual_forward.1} parent=27 // pred_region
        %s327 = smul.u32 8, %s23
        %p328 = scmp.lt.s32.totalorder %s22, 1
        %s329 = scalar_select %p328, %s22, 1
        %p330 = scmp.lt.s32.totalorder %s327, 15
        %s331 = scalar_select %p330, %s327, 15
        %s332 = smul.addr %s331, 2
        %s333 = smul.addr %s329, 32
        %s334 = sadd.s32 %s332, %s333
        %s335 = smul.addr %s334, 8
        %s336 = scalar_lea.vmem %s0, %s335
        %s337 = smul.u32 8, %s23
      $region32: #{cond_conv_residual_forward.1} parent=27 // pred_fallthru
        _
      // Predicated region
      $region33: #{cond_conv_residual_forward.1} parent=27 // pred_check
        %p338 = pneg %p85
      $region34: #{cond_conv_residual_forward.1} parent=27 // pred_check_branch
        %340 = sbr.rel (%p338) target = $region36
      $region35: #{cond_conv_residual_forward.1} parent=27 // pred_region
        %s341 = smul.u32 %s23, 8
        %s342 = ssub.s32 %s341, 1
        %p343 = scmp.gt.s32.totalorder %s342, 0
        %s344 = scalar_select %p343, %s342, 0
        %p345 = scmp.lt.s32.totalorder %s22, 1
        %s346 = scalar_select %p345, %s22, 1
        %p347 = scmp.lt.s32.totalorder %s344, 15
        %s348 = scalar_select %p347, %s344, 15
        %s349 = smul.addr %s348, 2
        %s350 = smul.addr %s346, 32
        %s351 = sadd.s32 %s349, %s350
        %s352 = smul.addr %s351, 8
        %s353 = scalar_lea.vmem %s1, %s352
        %s354 = smul.u32 %s23, 8
        %s355 = ssub.s32 %s354, 1
        %p356 = scmp.gt.s32.totalorder %s355, 0
        %s357 = scalar_select %p356, %s355, 0
      $region36: #{cond_conv_residual_forward.1} parent=27 // pred_fallthru
        _
      // Predicated region
      $region37: #{cond_conv_residual_forward.1} parent=27 // pred_check
        %p358 = pneg %p121
      $region38: #{cond_conv_residual_forward.1} parent=27 // pred_check_branch
        %360 = sbr.rel (%p358) target = $region40
      $region39: #{cond_conv_residual_forward.1} parent=27 // pred_region
        %s361 = smul.u32 %s23, 8
        %s362 = sadd.s32 %s361, 8
        %p363 = scmp.lt.s32.totalorder %s362, 15
        %s364 = scalar_select %p363, %s362, 15
        %p365 = scmp.lt.s32.totalorder %s22, 1
        %s366 = scalar_select %p365, %s22, 1
        %p367 = scmp.lt.s32.totalorder %s364, 15
        %s368 = scalar_select %p367, %s364, 15
        %s369 = smul.addr %s368, 2
        %s370 = smul.addr %s366, 32
        %s371 = sadd.s32 %s369, %s370
        %s372 = smul.addr %s371, 8
        %s373 = scalar_lea.vmem %s2, %s372
        %s374 = smul.u32 %s23, 8
        %s375 = sadd.s32 %s374, 8
        %p376 = scmp.lt.s32.totalorder %s375, 15
        %s377 = scalar_select %p376, %s375, 15
      $region40: #{cond_conv_residual_forward.1} parent=27 // pred_fallthru
        _
      // Predicated region
      $region41: #{cond_conv_residual_forward.1} parent=27 // pred_check
        %p378 = pneg %p147
      $region42: #{cond_conv_residual_forward.1} parent=27 // pred_check_branch
        %380 = sbr.rel (%p378) target = $region44
      $region43: #{cond_conv_residual_forward.1} parent=27 // pred_region
        %p381 = scmp.lt.s32.totalorder %s22, 1
        %s382 = scalar_select %p381, %s22, 1
        %s383 = smul.addr %s382, 4
        %s384 = scalar_lea.vmem %s3, %s383
      $region44: #{cond_conv_residual_forward.1} parent=27 // pred_fallthru
        _
      // Predicated region
      $region45: #{cond_conv_residual_forward.1} parent=27 // pred_check
        %p385 = pneg %p173
      $region46: #{cond_conv_residual_forward.1} parent=27 // pred_check_branch
        %387 = sbr.rel (%p385) target = $region48
      $region47: #{cond_conv_residual_forward.1} parent=27 // pred_region
        %p388 = scmp.lt.s32.totalorder %s22, 1
        %s389 = scalar_select %p388, %s22, 1
        %s390 = smul.addr %s389, 2
        %s391 = smul.addr %s390, 8
        %s392 = scalar_lea.vmem %s4, %s391
      $region48: #{cond_conv_residual_forward.1} parent=27 // pred_fallthru
        _
      // Predicated region
      $region49: #{cond_conv_residual_forward.1} parent=27 // pred_check
        %p393 = pneg %p199
      $region50: #{cond_conv_residual_forward.1} parent=27 // pred_check_branch
        %395 = sbr.rel (%p393) target = $region52
      $region51: #{cond_conv_residual_forward.1} parent=27 // pred_region
        %p396 = scmp.lt.s32.totalorder %s22, 1
        %s397 = scalar_select %p396, %s22, 1
        %s398 = smul.addr %s397, 8
        %s399 = scalar_lea.vmem %s5, %s398
      $region52: #{cond_conv_residual_forward.1} parent=27 // pred_fallthru
        _
    $region28: #{cond_conv_residual_forward.1} parent=5 // pred_fallthru
      _
    %p400 = scmp.le.s32.totalorder 1, %s15
    %p401 = scmp.lt.s32.totalorder %s15, 5
    %p402 = pnand %p400, %p401
    %p403 = pneg %p402
    // Predicated region
    $region53: #{cond_conv_residual_forward.1} parent=5 // pred_check
      _
    $region54: #{cond_conv_residual_forward.1} parent=5 // pred_check_branch
      %405 = sbr.rel (%p402) target = $region56
    $region55: #{cond_conv_residual_forward.1} parent=5 // pred_region
      %s406 = ssub.s32 %s15, 1
      %s407 = smul.u32 8, %s25
      %p408 = scmp.lt.s32.totalorder %s24, 1
      %s409 = scalar_select %p408, %s24, 1
      %p410 = scmp.lt.s32.totalorder %s407, 15
      %s411 = scalar_select %p410, %s407, 15
      %s412 = smul.addr %s411, 2
      %s413 = smul.addr %s409, 32
      %s414 = sadd.s32 %s412, %s413
      %s415 = smul.addr %s414, 8
      %s416 = scalar_lea.vmem %s0, %s415
      %p417 = pneg %p55
      %p418 = pneg %p52
      %s419 = smul.u32 %s25, 8
      %s420 = ssub.s32 %s419, 1
      %p421 = scmp.gt.s32.totalorder %s420, 0
      %s422 = scalar_select %p421, %s420, 0
      %p423 = scmp.lt.s32.totalorder %s24, 1
      %s424 = scalar_select %p423, %s24, 1
      %p425 = scmp.lt.s32.totalorder %s422, 15
      %s426 = scalar_select %p425, %s422, 15
      %s427 = smul.addr %s426, 2
      %s428 = smul.addr %s424, 32
      %s429 = sadd.s32 %s427, %s428
      %s430 = smul.addr %s429, 8
      %s431 = scalar_lea.vmem %s1, %s430
      %p432 = pneg %p91
      %p433 = pneg %p88
      %s434 = smul.u32 %s25, 8
      %s435 = sadd.s32 %s434, 8
      %p436 = scmp.lt.s32.totalorder %s435, 15
      %s437 = scalar_select %p436, %s435, 15
      %p438 = scmp.lt.s32.totalorder %s24, 1
      %s439 = scalar_select %p438, %s24, 1
      %p440 = scmp.lt.s32.totalorder %s437, 15
      %s441 = scalar_select %p440, %s437, 15
      %s442 = smul.addr %s441, 2
      %s443 = smul.addr %s439, 32
      %s444 = sadd.s32 %s442, %s443
      %s445 = smul.addr %s444, 8
      %s446 = scalar_lea.vmem %s2, %s445
      %p447 = pneg %p127
      %p448 = pneg %p124
      %p449 = scmp.lt.s32.totalorder %s24, 1
      %s450 = scalar_select %p449, %s24, 1
      %s451 = smul.addr %s450, 4
      %s452 = scalar_lea.vmem %s3, %s451
      %p453 = pneg %p153
      %p454 = pneg %p150
      %p455 = scmp.lt.s32.totalorder %s24, 1
      %s456 = scalar_select %p455, %s24, 1
      %s457 = smul.addr %s456, 2
      %s458 = smul.addr %s457, 8
      %s459 = scalar_lea.vmem %s4, %s458
      %p460 = pneg %p179
      %p461 = pneg %p176
      %p462 = scmp.lt.s32.totalorder %s24, 1
      %s463 = scalar_select %p462, %s24, 1
      %s464 = smul.addr %s463, 8
      %s465 = scalar_lea.vmem %s5, %s464
      %p466 = pneg %p205
      %p467 = pneg %p202
      %p468 = pneg %p226
      %p469 = pneg %p223
      %p470 = pneg %p247
      %p471 = pneg %p244
      %p472 = pneg %p268
      %p473 = pneg %p265
      %p474 = pneg %p296
      %p475 = pneg %p293
      %s476 = smul.u32 16, %s25
      %p477 = scmp.lt.s32.totalorder %s24, 1
      %s478 = scalar_select %p477, %s24, 1
      %p479 = scmp.lt.s32.totalorder %s476, 31
      %s480 = scalar_select %p479, %s476, 31
      %s481 = smul.addr %s478, 32
      %s482 = sadd.s32 %s480, %s481
      %s483 = smul.addr %s482, 8
      %s484 = scalar_lea.vmem %s9, %s483
      %s485 = smul.u32 8, %s25
      %p486 = scmp.lt.s32.totalorder %s24, 1
      %s487 = scalar_select %p486, %s24, 1
      %p488 = scmp.lt.s32.totalorder %s485, 15
      %s489 = scalar_select %p488, %s485, 15
      %s490 = smul.addr %s489, 2
      %s491 = smul.addr %s487, 32
      %s492 = sadd.s32 %s490, %s491
      %s493 = smul.addr %s492, 8
      %s494 = scalar_lea.vmem %s0, %s493
      %s495 = smul.u32 8, %s25
      %s496 = smul.u32 %s25, 8
      %s497 = ssub.s32 %s496, 1
      %p498 = scmp.gt.s32.totalorder %s497, 0
      %s499 = scalar_select %p498, %s497, 0
      %p500 = scmp.lt.s32.totalorder %s24, 1
      %s501 = scalar_select %p500, %s24, 1
      %p502 = scmp.lt.s32.totalorder %s499, 15
      %s503 = scalar_select %p502, %s499, 15
      %s504 = smul.addr %s503, 2
      %s505 = smul.addr %s501, 32
      %s506 = sadd.s32 %s504, %s505
      %s507 = smul.addr %s506, 8
      %s508 = scalar_lea.vmem %s1, %s507
      %s509 = smul.u32 %s25, 8
      %s510 = ssub.s32 %s509, 1
      %p511 = scmp.gt.s32.totalorder %s510, 0
      %s512 = scalar_select %p511, %s510, 0
      %s513 = smul.u32 %s25, 8
      %s514 = sadd.s32 %s513, 8
      %p515 = scmp.lt.s32.totalorder %s514, 15
      %s516 = scalar_select %p515, %s514, 15
      %p517 = scmp.lt.s32.totalorder %s24, 1
      %s518 = scalar_select %p517, %s24, 1
      %p519 = scmp.lt.s32.totalorder %s516, 15
      %s520 = scalar_select %p519, %s516, 15
      %s521 = smul.addr %s520, 2
      %s522 = smul.addr %s518, 32
      %s523 = sadd.s32 %s521, %s522
      %s524 = smul.addr %s523, 8
      %s525 = scalar_lea.vmem %s2, %s524
      %s526 = smul.u32 %s25, 8
      %s527 = sadd.s32 %s526, 8
      %p528 = scmp.lt.s32.totalorder %s527, 15
      %s529 = scalar_select %p528, %s527, 15
      %p530 = scmp.lt.s32.totalorder %s24, 1
      %s531 = scalar_select %p530, %s24, 1
      %s532 = smul.addr %s531, 4
      %s533 = scalar_lea.vmem %s3, %s532
      %p534 = scmp.lt.s32.totalorder %s24, 1
      %s535 = scalar_select %p534, %s24, 1
      %s536 = smul.addr %s535, 2
      %s537 = smul.addr %s536, 8
      %s538 = scalar_lea.vmem %s4, %s537
      %p539 = scmp.lt.s32.totalorder %s24, 1
      %s540 = scalar_select %p539, %s24, 1
      %s541 = smul.addr %s540, 8
      %s542 = scalar_lea.vmem %s5, %s541
      %s543 = smul.u32 16, %s25
      %p544 = scmp.lt.s32.totalorder %s24, 1
      %s545 = scalar_select %p544, %s24, 1
      %p546 = scmp.lt.s32.totalorder %s543, 31
      %s547 = scalar_select %p546, %s543, 31
      %s548 = smul.addr %s545, 32
      %s549 = sadd.s32 %s547, %s548
      %s550 = smul.addr %s549, 8
      %s551 = scalar_lea.vmem %s9, %s550
      %s552 = smul.u32 16, %s25
      %v553 = vld [vmem:[%s494] sm:$0xff]
      %v554 = vld [vmem:[%s494 + $0x8] sm:$0xff]
      %v555 = vld [vmem:[%s494 + $0x10] sm:$0xff]
      %v556 = vld [vmem:[%s494 + $0x18] sm:$0xff]
      %v557 = vld [vmem:[%s494 + $0x20] sm:$0xff]
      %v558 = vld [vmem:[%s494 + $0x28] sm:$0xff]
      %v559 = vld [vmem:[%s494 + $0x30] sm:$0xff]
      %v560 = vld [vmem:[%s494 + $0x38] sm:$0xff]
      %v561 = vld [vmem:[%s494 + $0x40] sm:$0xff]
      %v562 = vld [vmem:[%s494 + $0x48] sm:$0xff]
      %v563 = vld [vmem:[%s494 + $0x50] sm:$0xff]
      %v564 = vld [vmem:[%s494 + $0x58] sm:$0xff]
      %v565 = vld [vmem:[%s494 + $0x60] sm:$0xff]
      %v566 = vld [vmem:[%s494 + $0x68] sm:$0xff]
      %v567 = vld [vmem:[%s494 + $0x70] sm:$0xff]
      %v568 = vld [vmem:[%s494 + $0x78] sm:$0xff]
      %v569 = vld [vmem:[%s508] sm:$0xff]
      %v570 = vld [vmem:[%s508 + $0x8] sm:$0xff]
      %v571 = vld [vmem:[%s525] sm:$0xff]
      %v572 = vld [vmem:[%s525 + $0x8] sm:$0xff]
      %v573 = vld [vmem:[%s533] sm:$0xf]
      %v574 = vld [vmem:[%s6] sm:$0x1]
      %v576 = vlaneseq
      %v577 = vshrl.u32 %v576, 7
      %v578 = vsub.s32 0, %v577
      %v579 = vrot.slane %v574, %v578
      %vm581 = vcmask 31744
      %v583 = vsel %vm581, %v569, 0
      %v586 = vsel %vm581, %v570, 0
      %v589 = vsel %vm581, %v553, 0
      %v592 = vsel %vm581, %v554, 0
      %v595 = vsel %vm581, %v555, 0
      %v598 = vsel %vm581, %v556, 0
      %v601 = vsel %vm581, %v557, 0
      %v604 = vsel %vm581, %v558, 0
      %v607 = vsel %vm581, %v559, 0
      %v610 = vsel %vm581, %v560, 0
      %v613 = vsel %vm581, %v561, 0
      %v616 = vsel %vm581, %v562, 0
      %v619 = vsel %vm581, %v563, 0
      %v622 = vsel %vm581, %v564, 0
      %v625 = vsel %vm581, %v565, 0
      %v628 = vsel %vm581, %v566, 0
      %v631 = vsel %vm581, %v567, 0
      %v634 = vsel %vm581, %v568, 0
      %v637 = vsel %vm581, %v571, 0
      %v640 = vsel %vm581, %v572, 0
      %vm642 = vcmask 1043456
      %v644 = vsel %vm642, %v573, 0
      %646 = vmatprep.subr.mxu0 0.0
      %647 = vmatpush1.msra.mxu0 0.0
      %648 = vmatprep.subr.mxu0 0.0
      %649 = vmatpush1.msra.mxu0 0.0
      %650 = vmatprep.subr.mxu0 0.0
      %651 = vmatpush1.msra.mxu0 0.0
      %652 = vmatprep.subr.mxu0 0.0
      %653 = vmatpush1.msra.mxu0 0.0
      %654 = vmatprep.subr.mxu0 0.0
      %655 = vmatpush1.msra.mxu0 0.0
      %656 = vmatprep.subr.mxu0 0.0
      %657 = vmatpush1.msra.mxu0 0.0
      %658 = vmatprep.subr.mxu0 0.0
      %659 = vmatpush1.msra.mxu0 0.0
      %660 = vmatprep.subr.mxu0 0.0
      %661 = vmatpush1.msra.mxu0 0.0
      %662 = vmatprep.subr.mxu0 0.0
      %663 = vmatpush1.msra.mxu0 0.0
      %664 = vmatprep.subr.mxu0 0.0
      %665 = vmatpush1.msra.mxu0 0.0
      %666 = vmatprep.subr.mxu0 0.0
      %667 = vmatpush1.msra.mxu0 0.0
      %668 = vmatprep.subr.mxu0 0.0
      %669 = vmatpush1.msra.mxu0 0.0
      %670 = vmatprep.subr.mxu0 0.0
      %671 = vmatpush1.msra.mxu0 0.0
      %672 = vmatprep.subr.mxu0 0.0
      %673 = vmatpush1.msra.mxu0 0.0
      %674 = vmatprep.subr.mxu0 0.0
      %675 = vmatpush1.msra.mxu0 0.0
      %676 = vmatprep.subr.mxu0 0.0
      %677 = vmatpush1.msra.mxu0 %v644
      %678 = vmatprep.subr.mxu0 0.0
      %679 = vmatpush2.msra.mxu0 0.0
      %680 = vmatprep.subr.mxu0 0.0
      %681 = vmatpush2.msra.mxu0 0.0
      %682 = vmatprep.subr.mxu0 0.0
      %683 = vmatpush2.msra.mxu0 0.0
      %684 = vmatprep.subr.mxu0 0.0
      %685 = vmatpush2.msra.mxu0 0.0
      %686 = vmatprep.subr.mxu0 0.0
      %687 = vmatpush2.msra.mxu0 0.0
      %688 = vmatprep.subr.mxu0 0.0
      %689 = vmatpush2.msra.mxu0 0.0
      %690 = vmatprep.subr.mxu0 0.0
      %691 = vmatpush2.msra.mxu0 0.0
      %692 = vmatprep.subr.mxu0 0.0
      %693 = vmatpush2.msra.mxu0 0.0
      %694 = vmatprep.subr.mxu0 0.0
      %695 = vmatpush2.msra.mxu0 0.0
      %696 = vmatprep.subr.mxu0 0.0
      %697 = vmatpush2.msra.mxu0 0.0
      %698 = vmatprep.subr.mxu0 0.0
      %699 = vmatpush2.msra.mxu0 0.0
      %700 = vmatprep.subr.mxu0 0.0
      %701 = vmatpush2.msra.mxu0 0.0
      %702 = vmatprep.subr.mxu0 0.0
      %703 = vmatpush2.msra.mxu0 0.0
      %704 = vmatprep.subr.mxu0 0.0
      %705 = vmatpush2.msra.mxu0 0.0
      %706 = vmatprep.subr.mxu0 0.0
      %707 = vmatpush2.msra.mxu0 0.0
      %708 = vmatprep.subr.mxu0 0.0
      %709 = vmatpush2.msra.mxu0 0.0
      %710 = vmatprep.mubr.f32.mxu0 0.0
      %711 = vmatmul.mubr.f32.gmra.mxu0 %v583
      %v712 = vpop.f32.mrf.mxu0
      %v713 = vadd.f32 %v579, %v712
      %v714 = vpop.f32.mrf.mxu0
      %715 = vmatprep.mubr.f32.mxu0 0.0
      %716 = vmatmul.mubr.f32.gmra.mxu0 %v586
      %v717 = vpop.f32.mrf.mxu0
      %v718 = vadd.f32 %v579, %v717
      %v719 = vpop.f32.mrf.mxu0
      %720 = vmatprep.mubr.f32.mxu0 0.0
      %721 = vmatmul.mubr.f32.gmra.mxu0 %v589
      %v722 = vpop.f32.mrf.mxu0
      %v723 = vadd.f32 %v579, %v722
      %v724 = vpop.f32.mrf.mxu0
      %725 = vmatprep.mubr.f32.mxu0 0.0
      %726 = vmatmul.mubr.f32.gmra.mxu0 %v592
      %v727 = vpop.f32.mrf.mxu0
      %v728 = vadd.f32 %v579, %v727
      %v729 = vpop.f32.mrf.mxu0
      %730 = vmatprep.mubr.f32.mxu0 0.0
      %731 = vmatmul.mubr.f32.gmra.mxu0 %v595
      %v732 = vpop.f32.mrf.mxu0
      %v733 = vadd.f32 %v579, %v732
      %v734 = vpop.f32.mrf.mxu0
      %735 = vmatprep.mubr.f32.mxu0 0.0
      %736 = vmatmul.mubr.f32.gmra.mxu0 %v598
      %v737 = vpop.f32.mrf.mxu0
      %v738 = vadd.f32 %v579, %v737
      %v739 = vpop.f32.mrf.mxu0
      %740 = vmatprep.mubr.f32.mxu0 0.0
      %741 = vmatmul.mubr.f32.gmra.mxu0 %v601
      %v742 = vpop.f32.mrf.mxu0
      %v743 = vadd.f32 %v579, %v742
      %v744 = vpop.f32.mrf.mxu0
      %745 = vmatprep.mubr.f32.mxu0 0.0
      %746 = vmatmul.mubr.f32.gmra.mxu0 %v604
      %v747 = vpop.f32.mrf.mxu0
      %v748 = vadd.f32 %v579, %v747
      %v749 = vpop.f32.mrf.mxu0
      %750 = vmatprep.mubr.f32.mxu0 0.0
      %751 = vmatmul.mubr.f32.gmra.mxu0 %v607
      %v752 = vpop.f32.mrf.mxu0
      %v753 = vadd.f32 %v579, %v752
      %v754 = vpop.f32.mrf.mxu0
      %755 = vmatprep.mubr.f32.mxu0 0.0
      %756 = vmatmul.mubr.f32.gmra.mxu0 %v610
      %v757 = vpop.f32.mrf.mxu0
      %v758 = vadd.f32 %v579, %v757
      %v759 = vpop.f32.mrf.mxu0
      %760 = vmatprep.mubr.f32.mxu0 0.0
      %761 = vmatmul.mubr.f32.gmra.mxu0 %v613
      %v762 = vpop.f32.mrf.mxu0
      %v763 = vadd.f32 %v579, %v762
      %v764 = vpop.f32.mrf.mxu0
      %765 = vmatprep.mubr.f32.mxu0 0.0
      %766 = vmatmul.mubr.f32.gmra.mxu0 %v616
      %v767 = vpop.f32.mrf.mxu0
      %v768 = vadd.f32 %v579, %v767
      %v769 = vpop.f32.mrf.mxu0
      %770 = vmatprep.mubr.f32.mxu0 0.0
      %771 = vmatmul.mubr.f32.gmra.mxu0 %v619
      %v772 = vpop.f32.mrf.mxu0
      %v773 = vadd.f32 %v579, %v772
      %v774 = vpop.f32.mrf.mxu0
      %775 = vmatprep.mubr.f32.mxu0 0.0
      %776 = vmatmul.mubr.f32.gmra.mxu0 %v622
      %v777 = vpop.f32.mrf.mxu0
      %v778 = vadd.f32 %v579, %v777
      %v779 = vpop.f32.mrf.mxu0
      %780 = vmatprep.mubr.f32.mxu0 0.0
      %781 = vmatmul.mubr.f32.gmra.mxu0 %v625
      %v782 = vpop.f32.mrf.mxu0
      %v783 = vadd.f32 %v579, %v782
      %v784 = vpop.f32.mrf.mxu0
      %785 = vmatprep.mubr.f32.mxu0 0.0
      %786 = vmatmul.mubr.f32.gmra.mxu0 %v628
      %v787 = vpop.f32.mrf.mxu0
      %v788 = vadd.f32 %v579, %v787
      %v789 = vpop.f32.mrf.mxu0
      %790 = vmatprep.mubr.f32.mxu0 0.0
      %791 = vmatmul.mubr.f32.gmra.mxu0 %v631
      %v792 = vpop.f32.mrf.mxu0
      %v793 = vadd.f32 %v579, %v792
      %v794 = vpop.f32.mrf.mxu0
      %795 = vmatprep.mubr.f32.mxu0 0.0
      %796 = vmatmul.mubr.f32.gmra.mxu0 %v634
      %v797 = vpop.f32.mrf.mxu0
      %v798 = vadd.f32 %v579, %v797
      %v799 = vpop.f32.mrf.mxu0
      %800 = vmatprep.mubr.f32.mxu0 0.0
      %801 = vmatmul.mubr.f32.gmra.mxu0 %v637
      %v802 = vpop.f32.mrf.mxu0
      %v803 = vadd.f32 %v579, %v802
      %v804 = vpop.f32.mrf.mxu0
      %805 = vmatprep.mubr.f32.mxu0 0.0
      %806 = vmatmul.mubr.f32.gmra.mxu0 %v640
      %v807 = vpop.f32.mrf.mxu0
      %v808 = vadd.f32 %v579, %v807
      %v809 = vpop.f32.mrf.mxu0
      %810 = vdwg.mxu0
      %v811 = vmax.f32 %v713, 0.0
      %v812 = vmax.f32 %v718, 0.0
      %v813 = vmax.f32 %v723, 0.0
      %v814 = vmax.f32 %v728, 0.0
      %v815 = vmax.f32 %v733, 0.0
      %v816 = vmax.f32 %v738, 0.0
      %v817 = vmax.f32 %v743, 0.0
      %v818 = vmax.f32 %v748, 0.0
      %v819 = vmax.f32 %v753, 0.0
      %v820 = vmax.f32 %v758, 0.0
      %v821 = vmax.f32 %v763, 0.0
      %v822 = vmax.f32 %v768, 0.0
      %v823 = vmax.f32 %v773, 0.0
      %v824 = vmax.f32 %v778, 0.0
      %v825 = vmax.f32 %v783, 0.0
      %v826 = vmax.f32 %v788, 0.0
      %v827 = vmax.f32 %v793, 0.0
      %v828 = vmax.f32 %v798, 0.0
      %v829 = vmax.f32 %v803, 0.0
      %v830 = vmax.f32 %v808, 0.0
      %s831 = smul.u32 %s25, 8
      %v832 = vstv %s831
      %v833 = vadd.s32 %v832, 2
      %v834 = vadd.s32 %v832, 3
      %v835 = vadd.s32 %v832, 4
      %v836 = vadd.s32 %v832, 5
      %v837 = vadd.s32 %v832, 6
      %v838 = vadd.s32 %v832, 7
      %v839 = vadd.s32 %v832, 8
      %v840 = vadd.s32 %v832, 9
      %v841 = vsub.s32 %v832, 1
      %v842 = vsub.s32 %v833, 1
      %v843 = vsub.s32 %v834, 1
      %v844 = vsub.s32 %v835, 1
      %v845 = vsub.s32 %v836, 1
      %v846 = vsub.s32 %v837, 1
      %v847 = vsub.s32 %v838, 1
      %v848 = vsub.s32 %v839, 1
      %v849 = vsub.s32 %v840, 1
      %vm850 = vcmp.ge.s32.totalorder %v841, 0
      %vm851 = vcmp.ge.s32.totalorder %v832, 0
      %vm852 = vcmp.ge.s32.totalorder %v842, 0
      %vm853 = vcmp.ge.s32.totalorder %v843, 0
      %vm854 = vcmp.ge.s32.totalorder %v844, 0
      %vm855 = vcmp.ge.s32.totalorder %v845, 0
      %vm856 = vcmp.ge.s32.totalorder %v846, 0
      %vm857 = vcmp.ge.s32.totalorder %v847, 0
      %vm858 = vcmp.ge.s32.totalorder %v848, 0
      %vm859 = vcmp.ge.s32.totalorder %v849, 0
      %vm860 = vcmp.lt.s32.totalorder %v841, 16
      %vm861 = vcmp.lt.s32.totalorder %v832, 16
      %vm862 = vcmp.lt.s32.totalorder %v842, 16
      %vm863 = vcmp.lt.s32.totalorder %v843, 16
      %vm864 = vcmp.lt.s32.totalorder %v844, 16
      %vm865 = vcmp.lt.s32.totalorder %v845, 16
      %vm866 = vcmp.lt.s32.totalorder %v846, 16
      %vm867 = vcmp.lt.s32.totalorder %v847, 16
      %vm868 = vcmp.lt.s32.totalorder %v848, 16
      %vm869 = vcmp.lt.s32.totalorder %v849, 16
      %vm870 = vmand %vm850, %vm860
      %vm871 = vmand %vm851, %vm861
      %vm872 = vmand %vm852, %vm862
      %vm873 = vmand %vm853, %vm863
      %vm874 = vmand %vm854, %vm864
      %vm875 = vmand %vm855, %vm865
      %vm876 = vmand %vm856, %vm866
      %vm877 = vmand %vm857, %vm867
      %vm878 = vmand %vm858, %vm868
      %vm879 = vmand %vm859, %vm869
      %v880 = vsel %vm870, 1, 0
      %v881 = vsel %vm871, 1, 0
      %v882 = vsel %vm872, 1, 0
      %v883 = vsel %vm873, 1, 0
      %v884 = vsel %vm874, 1, 0
      %v885 = vsel %vm875, 1, 0
      %v886 = vsel %vm876, 1, 0
      %v887 = vsel %vm877, 1, 0
      %v888 = vsel %vm878, 1, 0
      %v889 = vsel %vm879, 1, 0
      %vm890 = vcmp.eq.s32.totalorder %v880, 1
      %vm891 = vcmp.eq.s32.totalorder %v881, 1
      %vm892 = vcmp.eq.s32.totalorder %v882, 1
      %vm893 = vcmp.eq.s32.totalorder %v883, 1
      %vm894 = vcmp.eq.s32.totalorder %v884, 1
      %vm895 = vcmp.eq.s32.totalorder %v885, 1
      %vm896 = vcmp.eq.s32.totalorder %v886, 1
      %vm897 = vcmp.eq.s32.totalorder %v887, 1
      %vm898 = vcmp.eq.s32.totalorder %v888, 1
      %vm899 = vcmp.eq.s32.totalorder %v889, 1
      %v900 = vsel %vm890, %v811, 0.0
      %v901 = vsel %vm890, %v812, 0.0
      %v902 = vsel %vm891, %v813, 0.0
      %v903 = vsel %vm891, %v814, 0.0
      %v904 = vsel %vm892, %v815, 0.0
      %v905 = vsel %vm892, %v816, 0.0
      %v906 = vsel %vm893, %v817, 0.0
      %v907 = vsel %vm893, %v818, 0.0
      %v908 = vsel %vm894, %v819, 0.0
      %v909 = vsel %vm894, %v820, 0.0
      %v910 = vsel %vm895, %v821, 0.0
      %v911 = vsel %vm895, %v822, 0.0
      %v912 = vsel %vm896, %v823, 0.0
      %v913 = vsel %vm896, %v824, 0.0
      %v914 = vsel %vm897, %v825, 0.0
      %v915 = vsel %vm897, %v826, 0.0
      %v916 = vsel %vm898, %v827, 0.0
      %v917 = vsel %vm898, %v828, 0.0
      %v918 = vsel %vm899, %v829, 0.0
      %v919 = vsel %vm899, %v830, 0.0
      %v920 = vld [vmem:[%s538] sm:$0xff]
      %v921 = vld [vmem:[%s538 + $0x8] sm:$0x1]
      %v922 = vlaneseq
      %v923 = vshrl.u32 %v922, 7
      %v924 = vadd.s32 %v923, 8
      %v925 = vrot.slane %v900, 7
      %v926 = vrot.slane %v902, 7
      %v927 = vrot.slane %v904, 7
      %v928 = vrot.slane %v906, 7
      %v929 = vrot.slane %v908, 7
      %v930 = vrot.slane %v910, 7
      %v931 = vrot.slane %v912, 7
      %v932 = vrot.slane %v914, 7
      %v933 = vrot.slane %v916, 7
      %v934 = vrot.slane %v918, 7
      %v935 = vrot.slane %v901, 7
      %v936 = vrot.slane %v903, 7
      %v937 = vrot.slane %v905, 7
      %v938 = vrot.slane %v907, 7
      %v939 = vrot.slane %v909, 7
      %v940 = vrot.slane %v911, 7
      %v941 = vrot.slane %v913, 7
      %v942 = vrot.slane %v915, 7
      %v943 = vrot.slane %v917, 7
      %v944 = vrot.slane %v919, 7
      %vm945 = vcmp.lt.s32.totalorder %v923, 1
      %v946 = vsel %vm945, %v925, %v935
      %v947 = vsel %vm945, %v926, %v936
      %v948 = vsel %vm945, %v927, %v937
      %v949 = vsel %vm945, %v928, %v938
      %v950 = vsel %vm945, %v929, %v939
      %v951 = vsel %vm945, %v930, %v940
      %v952 = vsel %vm945, %v931, %v941
      %v953 = vsel %vm945, %v932, %v942
      %v954 = vsel %vm945, %v933, %v943
      %v955 = vsel %vm945, %v934, %v944
      %v956 = vsel %vm945, %v935, %v925
      %v957 = vsel %vm945, %v936, %v926
      %v958 = vsel %vm945, %v937, %v927
      %v959 = vsel %vm945, %v938, %v928
      %v960 = vsel %vm945, %v939, %v929
      %v961 = vsel %vm945, %v940, %v930
      %v962 = vsel %vm945, %v941, %v931
      %v963 = vsel %vm945, %v942, %v932
      %v964 = vsel %vm945, %v943, %v933
      %v965 = vsel %vm945, %v944, %v934
      %vm966 = vcmp.ge.s32.totalorder %v923, 1
      %vm967 = vcmp.ge.s32.totalorder %v924, 1
      %v968 = vsel %vm966, 1, 0
      %v969 = vsel %vm967, 1, 0
      %vm970 = vcmp.eq.s32.totalorder %v968, 1
      %vm971 = vcmp.eq.s32.totalorder %v969, 1
      %v972 = vsel %vm970, %v956, 0.0
      %v973 = vsel %vm971, %v946, 0.0
      %v974 = vsel %vm970, %v957, 0.0
      %v975 = vsel %vm971, %v947, 0.0
      %v976 = vsel %vm970, %v958, 0.0
      %v977 = vsel %vm971, %v948, 0.0
      %v978 = vsel %vm970, %v959, 0.0
      %v979 = vsel %vm971, %v949, 0.0
      %v980 = vsel %vm970, %v960, 0.0
      %v981 = vsel %vm971, %v950, 0.0
      %v982 = vsel %vm970, %v961, 0.0
      %v983 = vsel %vm971, %v951, 0.0
      %v984 = vsel %vm970, %v962, 0.0
      %v985 = vsel %vm971, %v952, 0.0
      %v986 = vsel %vm970, %v963, 0.0
      %v987 = vsel %vm971, %v953, 0.0
      %v988 = vsel %vm970, %v964, 0.0
      %v989 = vsel %vm971, %v954, 0.0
      %v990 = vsel %vm970, %v965, 0.0
      %v991 = vsel %vm971, %v955, 0.0
      %v992 = vlaneseq
      %v993 = vshrl.u32 %v992, 7
      %v994 = vsub.s32 0, %v993
      %v995 = vrot.slane %v920, %v994
      %v996 = vmul.f32 %v972, %v995
      %v997 = vmul.f32 %v973, %v995
      %v998 = vmul.f32 %v974, %v995
      %v999 = vmul.f32 %v975, %v995
      %v1000 = vmul.f32 %v976, %v995
      %v1001 = vmul.f32 %v977, %v995
      %v1002 = vmul.f32 %v978, %v995
      %v1003 = vmul.f32 %v979, %v995
      %v1004 = vmul.f32 %v980, %v995
      %v1005 = vmul.f32 %v981, %v995
      %v1006 = vmul.f32 %v982, %v995
      %v1007 = vmul.f32 %v983, %v995
      %v1008 = vmul.f32 %v984, %v995
      %v1009 = vmul.f32 %v985, %v995
      %v1010 = vmul.f32 %v986, %v995
      %v1011 = vmul.f32 %v987, %v995
      %v1012 = vadd.f32 %v996, 0.0
      %v1013 = vadd.f32 %v997, 0.0
      %v1014 = vadd.f32 %v998, 0.0
      %v1015 = vadd.f32 %v999, 0.0
      %v1016 = vadd.f32 %v1000, 0.0
      %v1017 = vadd.f32 %v1001, 0.0
      %v1018 = vadd.f32 %v1002, 0.0
      %v1019 = vadd.f32 %v1003, 0.0
      %v1020 = vadd.f32 %v1004, 0.0
      %v1021 = vadd.f32 %v1005, 0.0
      %v1022 = vadd.f32 %v1006, 0.0
      %v1023 = vadd.f32 %v1007, 0.0
      %v1024 = vadd.f32 %v1008, 0.0
      %v1025 = vadd.f32 %v1009, 0.0
      %v1026 = vadd.f32 %v1010, 0.0
      %v1027 = vadd.f32 %v1011, 0.0
      %v1028 = vlaneseq
      %v1029 = vshrl.u32 %v1028, 7
      %v1030 = vsub.s32 3, %v1029
      %v1031 = vrot.slane %v920, %v1030
      %v1032 = vmul.f32 %v974, %v1031
      %v1033 = vmul.f32 %v975, %v1031
      %v1034 = vmul.f32 %v976, %v1031
      %v1035 = vmul.f32 %v977, %v1031
      %v1036 = vmul.f32 %v978, %v1031
      %v1037 = vmul.f32 %v979, %v1031
      %v1038 = vmul.f32 %v980, %v1031
      %v1039 = vmul.f32 %v981, %v1031
      %v1040 = vmul.f32 %v982, %v1031
      %v1041 = vmul.f32 %v983, %v1031
      %v1042 = vmul.f32 %v984, %v1031
      %v1043 = vmul.f32 %v985, %v1031
      %v1044 = vmul.f32 %v986, %v1031
      %v1045 = vmul.f32 %v987, %v1031
      %v1046 = vmul.f32 %v988, %v1031
      %v1047 = vmul.f32 %v989, %v1031
      %v1048 = vadd.f32 %v1012, %v1032
      %v1049 = vadd.f32 %v1013, %v1033
      %v1050 = vadd.f32 %v1014, %v1034
      %v1051 = vadd.f32 %v1015, %v1035
      %v1052 = vadd.f32 %v1016, %v1036
      %v1053 = vadd.f32 %v1017, %v1037
      %v1054 = vadd.f32 %v1018, %v1038
      %v1055 = vadd.f32 %v1019, %v1039
      %v1056 = vadd.f32 %v1020, %v1040
      %v1057 = vadd.f32 %v1021, %v1041
      %v1058 = vadd.f32 %v1022, %v1042
      %v1059 = vadd.f32 %v1023, %v1043
      %v1060 = vadd.f32 %v1024, %v1044
      %v1061 = vadd.f32 %v1025, %v1045
      %v1062 = vadd.f32 %v1026, %v1046
      %v1063 = vadd.f32 %v1027, %v1047
      %v1064 = vlaneseq
      %v1065 = vshrl.u32 %v1064, 7
      %v1066 = vsub.s32 6, %v1065
      %v1067 = vrot.slane %v920, %v1066
      %v1068 = vmul.f32 %v976, %v1067
      %v1069 = vmul.f32 %v977, %v1067
      %v1070 = vmul.f32 %v978, %v1067
      %v1071 = vmul.f32 %v979, %v1067
      %v1072 = vmul.f32 %v980, %v1067
      %v1073 = vmul.f32 %v981, %v1067
      %v1074 = vmul.f32 %v982, %v1067
      %v1075 = vmul.f32 %v983, %v1067
      %v1076 = vmul.f32 %v984, %v1067
      %v1077 = vmul.f32 %v985, %v1067
      %v1078 = vmul.f32 %v986, %v1067
      %v1079 = vmul.f32 %v987, %v1067
      %v1080 = vmul.f32 %v988, %v1067
      %v1081 = vmul.f32 %v989, %v1067
      %v1082 = vmul.f32 %v990, %v1067
      %v1083 = vmul.f32 %v991, %v1067
      %v1084 = vadd.f32 %v1048, %v1068
      %v1085 = vadd.f32 %v1049, %v1069
      %v1086 = vadd.f32 %v1050, %v1070
      %v1087 = vadd.f32 %v1051, %v1071
      %v1088 = vadd.f32 %v1052, %v1072
      %v1089 = vadd.f32 %v1053, %v1073
      %v1090 = vadd.f32 %v1054, %v1074
      %v1091 = vadd.f32 %v1055, %v1075
      %v1092 = vadd.f32 %v1056, %v1076
      %v1093 = vadd.f32 %v1057, %v1077
      %v1094 = vadd.f32 %v1058, %v1078
      %v1095 = vadd.f32 %v1059, %v1079
      %v1096 = vadd.f32 %v1060, %v1080
      %v1097 = vadd.f32 %v1061, %v1081
      %v1098 = vadd.f32 %v1062, %v1082
      %v1099 = vadd.f32 %v1063, %v1083
      %v1100 = vlaneseq
      %v1101 = vshrl.u32 %v1100, 7
      %v1102 = vsub.s32 1, %v1101
      %v1103 = vrot.slane %v920, %v1102
      %v1104 = vmul.f32 %v900, %v1103
      %v1105 = vmul.f32 %v901, %v1103
      %v1106 = vmul.f32 %v902, %v1103
      %v1107 = vmul.f32 %v903, %v1103
      %v1108 = vmul.f32 %v904, %v1103
      %v1109 = vmul.f32 %v905, %v1103
      %v1110 = vmul.f32 %v906, %v1103
      %v1111 = vmul.f32 %v907, %v1103
      %v1112 = vmul.f32 %v908, %v1103
      %v1113 = vmul.f32 %v909, %v1103
      %v1114 = vmul.f32 %v910, %v1103
      %v1115 = vmul.f32 %v911, %v1103
      %v1116 = vmul.f32 %v912, %v1103
      %v1117 = vmul.f32 %v913, %v1103
      %v1118 = vmul.f32 %v914, %v1103
      %v1119 = vmul.f32 %v915, %v1103
      %v1120 = vadd.f32 %v1084, %v1104
      %v1121 = vadd.f32 %v1085, %v1105
      %v1122 = vadd.f32 %v1086, %v1106
      %v1123 = vadd.f32 %v1087, %v1107
      %v1124 = vadd.f32 %v1088, %v1108
      %v1125 = vadd.f32 %v1089, %v1109
      %v1126 = vadd.f32 %v1090, %v1110
      %v1127 = vadd.f32 %v1091, %v1111
      %v1128 = vadd.f32 %v1092, %v1112
      %v1129 = vadd.f32 %v1093, %v1113
      %v1130 = vadd.f32 %v1094, %v1114
      %v1131 = vadd.f32 %v1095, %v1115
      %v1132 = vadd.f32 %v1096, %v1116
      %v1133 = vadd.f32 %v1097, %v1117
      %v1134 = vadd.f32 %v1098, %v1118
      %v1135 = vadd.f32 %v1099, %v1119
      %v1136 = vlaneseq
      %v1137 = vshrl.u32 %v1136, 7
      %v1138 = vsub.s32 4, %v1137
      %v1139 = vrot.slane %v920, %v1138
      %v1140 = vmul.f32 %v902, %v1139
      %v1141 = vmul.f32 %v903, %v1139
      %v1142 = vmul.f32 %v904, %v1139
      %v1143 = vmul.f32 %v905, %v1139
      %v1144 = vmul.f32 %v906, %v1139
      %v1145 = vmul.f32 %v907, %v1139
      %v1146 = vmul.f32 %v908, %v1139
      %v1147 = vmul.f32 %v909, %v1139
      %v1148 = vmul.f32 %v910, %v1139
      %v1149 = vmul.f32 %v911, %v1139
      %v1150 = vmul.f32 %v912, %v1139
      %v1151 = vmul.f32 %v913, %v1139
      %v1152 = vmul.f32 %v914, %v1139
      %v1153 = vmul.f32 %v915, %v1139
      %v1154 = vmul.f32 %v916, %v1139
      %v1155 = vmul.f32 %v917, %v1139
      %v1156 = vadd.f32 %v1120, %v1140
      %v1157 = vadd.f32 %v1121, %v1141
      %v1158 = vadd.f32 %v1122, %v1142
      %v1159 = vadd.f32 %v1123, %v1143
      %v1160 = vadd.f32 %v1124, %v1144
      %v1161 = vadd.f32 %v1125, %v1145
      %v1162 = vadd.f32 %v1126, %v1146
      %v1163 = vadd.f32 %v1127, %v1147
      %v1164 = vadd.f32 %v1128, %v1148
      %v1165 = vadd.f32 %v1129, %v1149
      %v1166 = vadd.f32 %v1130, %v1150
      %v1167 = vadd.f32 %v1131, %v1151
      %v1168 = vadd.f32 %v1132, %v1152
      %v1169 = vadd.f32 %v1133, %v1153
      %v1170 = vadd.f32 %v1134, %v1154
      %v1171 = vadd.f32 %v1135, %v1155
      %v1172 = vlaneseq
      %v1173 = vshrl.u32 %v1172, 7
      %v1174 = vsub.s32 7, %v1173
      %v1175 = vrot.slane %v920, %v1174
      %v1176 = vmul.f32 %v904, %v1175
      %v1177 = vmul.f32 %v905, %v1175
      %v1178 = vmul.f32 %v906, %v1175
      %v1179 = vmul.f32 %v907, %v1175
      %v1180 = vmul.f32 %v908, %v1175
      %v1181 = vmul.f32 %v909, %v1175
      %v1182 = vmul.f32 %v910, %v1175
      %v1183 = vmul.f32 %v911, %v1175
      %v1184 = vmul.f32 %v912, %v1175
      %v1185 = vmul.f32 %v913, %v1175
      %v1186 = vmul.f32 %v914, %v1175
      %v1187 = vmul.f32 %v915, %v1175
      %v1188 = vmul.f32 %v916, %v1175
      %v1189 = vmul.f32 %v917, %v1175
      %v1190 = vmul.f32 %v918, %v1175
      %v1191 = vmul.f32 %v919, %v1175
      %v1192 = vadd.f32 %v1156, %v1176
      %v1193 = vadd.f32 %v1157, %v1177
      %v1194 = vadd.f32 %v1158, %v1178
      %v1195 = vadd.f32 %v1159, %v1179
      %v1196 = vadd.f32 %v1160, %v1180
      %v1197 = vadd.f32 %v1161, %v1181
      %v1198 = vadd.f32 %v1162, %v1182
      %v1199 = vadd.f32 %v1163, %v1183
      %v1200 = vadd.f32 %v1164, %v1184
      %v1201 = vadd.f32 %v1165, %v1185
      %v1202 = vadd.f32 %v1166, %v1186
      %v1203 = vadd.f32 %v1167, %v1187
      %v1204 = vadd.f32 %v1168, %v1188
      %v1205 = vadd.f32 %v1169, %v1189
      %v1206 = vadd.f32 %v1170, %v1190
      %v1207 = vadd.f32 %v1171, %v1191
      %v1208 = vrot.slane %v900, 1
      %v1209 = vrot.slane %v902, 1
      %v1210 = vrot.slane %v904, 1
      %v1211 = vrot.slane %v906, 1
      %v1212 = vrot.slane %v908, 1
      %v1213 = vrot.slane %v910, 1
      %v1214 = vrot.slane %v912, 1
      %v1215 = vrot.slane %v914, 1
      %v1216 = vrot.slane %v916, 1
      %v1217 = vrot.slane %v918, 1
      %v1218 = vrot.slane %v901, 1
      %v1219 = vrot.slane %v903, 1
      %v1220 = vrot.slane %v905, 1
      %v1221 = vrot.slane %v907, 1
      %v1222 = vrot.slane %v909, 1
      %v1223 = vrot.slane %v911, 1
      %v1224 = vrot.slane %v913, 1
      %v1225 = vrot.slane %v915, 1
      %v1226 = vrot.slane %v917, 1
      %v1227 = vrot.slane %v919, 1
      %vm1228 = vcmp.lt.s32.totalorder %v923, 7
      %v1229 = vsel %vm1228, %v1208, %v1218
      %v1230 = vsel %vm1228, %v1209, %v1219
      %v1231 = vsel %vm1228, %v1210, %v1220
      %v1232 = vsel %vm1228, %v1211, %v1221
      %v1233 = vsel %vm1228, %v1212, %v1222
      %v1234 = vsel %vm1228, %v1213, %v1223
      %v1235 = vsel %vm1228, %v1214, %v1224
      %v1236 = vsel %vm1228, %v1215, %v1225
      %v1237 = vsel %vm1228, %v1216, %v1226
      %v1238 = vsel %vm1228, %v1217, %v1227
      %v1239 = vsel %vm1228, %v1218, %v1208
      %v1240 = vsel %vm1228, %v1219, %v1209
      %v1241 = vsel %vm1228, %v1220, %v1210
      %v1242 = vsel %vm1228, %v1221, %v1211
      %v1243 = vsel %vm1228, %v1222, %v1212
      %v1244 = vsel %vm1228, %v1223, %v1213
      %v1245 = vsel %vm1228, %v1224, %v1214
      %v1246 = vsel %vm1228, %v1225, %v1215
      %v1247 = vsel %vm1228, %v1226, %v1216
      %v1248 = vsel %vm1228, %v1227, %v1217
      %vm1249 = vcmp.lt.s32.totalorder %v923, 15
      %vm1250 = vcmp.lt.s32.totalorder %v924, 15
      %v1251 = vsel %vm1249, 1, 0
      %v1252 = vsel %vm1250, 1, 0
      %vm1253 = vcmp.eq.s32.totalorder %v1251, 1
      %vm1254 = vcmp.eq.s32.totalorder %v1252, 1
      %v1255 = vsel %vm1253, %v1229, 0.0
      %v1256 = vsel %vm1254, %v1239, 0.0
      %v1257 = vsel %vm1253, %v1230, 0.0
      %v1258 = vsel %vm1254, %v1240, 0.0
      %v1259 = vsel %vm1253, %v1231, 0.0
      %v1260 = vsel %vm1254, %v1241, 0.0
      %v1261 = vsel %vm1253, %v1232, 0.0
      %v1262 = vsel %vm1254, %v1242, 0.0
      %v1263 = vsel %vm1253, %v1233, 0.0
      %v1264 = vsel %vm1254, %v1243, 0.0
      %v1265 = vsel %vm1253, %v1234, 0.0
      %v1266 = vsel %vm1254, %v1244, 0.0
      %v1267 = vsel %vm1253, %v1235, 0.0
      %v1268 = vsel %vm1254, %v1245, 0.0
      %v1269 = vsel %vm1253, %v1236, 0.0
      %v1270 = vsel %vm1254, %v1246, 0.0
      %v1271 = vsel %vm1253, %v1237, 0.0
      %v1272 = vsel %vm1254, %v1247, 0.0
      %v1273 = vsel %vm1253, %v1238, 0.0
      %v1274 = vsel %vm1254, %v1248, 0.0
      %v1275 = vlaneseq
      %v1276 = vshrl.u32 %v1275, 7
      %v1277 = vsub.s32 2, %v1276
      %v1278 = vrot.slane %v920, %v1277
      %v1279 = vmul.f32 %v1255, %v1278
      %v1280 = vmul.f32 %v1256, %v1278
      %v1281 = vmul.f32 %v1257, %v1278
      %v1282 = vmul.f32 %v1258, %v1278
      %v1283 = vmul.f32 %v1259, %v1278
      %v1284 = vmul.f32 %v1260, %v1278
      %v1285 = vmul.f32 %v1261, %v1278
      %v1286 = vmul.f32 %v1262, %v1278
      %v1287 = vmul.f32 %v1263, %v1278
      %v1288 = vmul.f32 %v1264, %v1278
      %v1289 = vmul.f32 %v1265, %v1278
      %v1290 = vmul.f32 %v1266, %v1278
      %v1291 = vmul.f32 %v1267, %v1278
      %v1292 = vmul.f32 %v1268, %v1278
      %v1293 = vmul.f32 %v1269, %v1278
      %v1294 = vmul.f32 %v1270, %v1278
      %v1295 = vadd.f32 %v1192, %v1279
      %v1296 = vadd.f32 %v1193, %v1280
      %v1297 = vadd.f32 %v1194, %v1281
      %v1298 = vadd.f32 %v1195, %v1282
      %v1299 = vadd.f32 %v1196, %v1283
      %v1300 = vadd.f32 %v1197, %v1284
      %v1301 = vadd.f32 %v1198, %v1285
      %v1302 = vadd.f32 %v1199, %v1286
      %v1303 = vadd.f32 %v1200, %v1287
      %v1304 = vadd.f32 %v1201, %v1288
      %v1305 = vadd.f32 %v1202, %v1289
      %v1306 = vadd.f32 %v1203, %v1290
      %v1307 = vadd.f32 %v1204, %v1291
      %v1308 = vadd.f32 %v1205, %v1292
      %v1309 = vadd.f32 %v1206, %v1293
      %v1310 = vadd.f32 %v1207, %v1294
      %v1311 = vlaneseq
      %v1312 = vshrl.u32 %v1311, 7
      %v1313 = vsub.s32 5, %v1312
      %v1314 = vrot.slane %v920, %v1313
      %v1315 = vmul.f32 %v1257, %v1314
      %v1316 = vmul.f32 %v1258, %v1314
      %v1317 = vmul.f32 %v1259, %v1314
      %v1318 = vmul.f32 %v1260, %v1314
      %v1319 = vmul.f32 %v1261, %v1314
      %v1320 = vmul.f32 %v1262, %v1314
      %v1321 = vmul.f32 %v1263, %v1314
      %v1322 = vmul.f32 %v1264, %v1314
      %v1323 = vmul.f32 %v1265, %v1314
      %v1324 = vmul.f32 %v1266, %v1314
      %v1325 = vmul.f32 %v1267, %v1314
      %v1326 = vmul.f32 %v1268, %v1314
      %v1327 = vmul.f32 %v1269, %v1314
      %v1328 = vmul.f32 %v1270, %v1314
      %v1329 = vmul.f32 %v1271, %v1314
      %v1330 = vmul.f32 %v1272, %v1314
      %v1331 = vadd.f32 %v1295, %v1315
      %v1332 = vadd.f32 %v1296, %v1316
      %v1333 = vadd.f32 %v1297, %v1317
      %v1334 = vadd.f32 %v1298, %v1318
      %v1335 = vadd.f32 %v1299, %v1319
      %v1336 = vadd.f32 %v1300, %v1320
      %v1337 = vadd.f32 %v1301, %v1321
      %v1338 = vadd.f32 %v1302, %v1322
      %v1339 = vadd.f32 %v1303, %v1323
      %v1340 = vadd.f32 %v1304, %v1324
      %v1341 = vadd.f32 %v1305, %v1325
      %v1342 = vadd.f32 %v1306, %v1326
      %v1343 = vadd.f32 %v1307, %v1327
      %v1344 = vadd.f32 %v1308, %v1328
      %v1345 = vadd.f32 %v1309, %v1329
      %v1346 = vadd.f32 %v1310, %v1330
      %v1347 = vlaneseq
      %v1348 = vshrl.u32 %v1347, 7
      %v1349 = vsub.s32 0, %v1348
      %v1350 = vrot.slane %v921, %v1349
      %v1351 = vmul.f32 %v1259, %v1350
      %v1352 = vmul.f32 %v1260, %v1350
      %v1353 = vmul.f32 %v1261, %v1350
      %v1354 = vmul.f32 %v1262, %v1350
      %v1355 = vmul.f32 %v1263, %v1350
      %v1356 = vmul.f32 %v1264, %v1350
      %v1357 = vmul.f32 %v1265, %v1350
      %v1358 = vmul.f32 %v1266, %v1350
      %v1359 = vmul.f32 %v1267, %v1350
      %v1360 = vmul.f32 %v1268, %v1350
      %v1361 = vmul.f32 %v1269, %v1350
      %v1362 = vmul.f32 %v1270, %v1350
      %v1363 = vmul.f32 %v1271, %v1350
      %v1364 = vmul.f32 %v1272, %v1350
      %v1365 = vmul.f32 %v1273, %v1350
      %v1366 = vmul.f32 %v1274, %v1350
      %v1367 = vadd.f32 %v1331, %v1351
      %v1368 = vadd.f32 %v1332, %v1352
      %v1369 = vadd.f32 %v1333, %v1353
      %v1370 = vadd.f32 %v1334, %v1354
      %v1371 = vadd.f32 %v1335, %v1355
      %v1372 = vadd.f32 %v1336, %v1356
      %v1373 = vadd.f32 %v1337, %v1357
      %v1374 = vadd.f32 %v1338, %v1358
      %v1375 = vadd.f32 %v1339, %v1359
      %v1376 = vadd.f32 %v1340, %v1360
      %v1377 = vadd.f32 %v1341, %v1361
      %v1378 = vadd.f32 %v1342, %v1362
      %v1379 = vadd.f32 %v1343, %v1363
      %v1380 = vadd.f32 %v1344, %v1364
      %v1381 = vadd.f32 %v1345, %v1365
      %v1382 = vadd.f32 %v1346, %v1366
      %v1383 = vld [vmem:[%s7] sm:$0x1]
      %v1385 = vlaneseq
      %v1386 = vshrl.u32 %v1385, 7
      %v1387 = vsub.s32 0, %v1386
      %v1388 = vrot.slane %v1383, %v1387
      %v1390 = vadd.f32 %v1367, %v1388
      %v1391 = vadd.f32 %v1368, %v1388
      %v1392 = vadd.f32 %v1369, %v1388
      %v1393 = vadd.f32 %v1370, %v1388
      %v1394 = vadd.f32 %v1371, %v1388
      %v1395 = vadd.f32 %v1372, %v1388
      %v1396 = vadd.f32 %v1373, %v1388
      %v1397 = vadd.f32 %v1374, %v1388
      %v1398 = vadd.f32 %v1375, %v1388
      %v1399 = vadd.f32 %v1376, %v1388
      %v1400 = vadd.f32 %v1377, %v1388
      %v1401 = vadd.f32 %v1378, %v1388
      %v1402 = vadd.f32 %v1379, %v1388
      %v1403 = vadd.f32 %v1380, %v1388
      %v1404 = vadd.f32 %v1381, %v1388
      %v1405 = vadd.f32 %v1382, %v1388
      %v1406 = vmax.f32 %v1390, 0.0
      %v1407 = vmax.f32 %v1391, 0.0
      %v1408 = vmax.f32 %v1392, 0.0
      %v1409 = vmax.f32 %v1393, 0.0
      %v1410 = vmax.f32 %v1394, 0.0
      %v1411 = vmax.f32 %v1395, 0.0
      %v1412 = vmax.f32 %v1396, 0.0
      %v1413 = vmax.f32 %v1397, 0.0
      %v1414 = vmax.f32 %v1398, 0.0
      %v1415 = vmax.f32 %v1399, 0.0
      %v1416 = vmax.f32 %v1400, 0.0
      %v1417 = vmax.f32 %v1401, 0.0
      %v1418 = vmax.f32 %v1402, 0.0
      %v1419 = vmax.f32 %v1403, 0.0
      %v1420 = vmax.f32 %v1404, 0.0
      %v1421 = vmax.f32 %v1405, 0.0
      %v1422 = vld [vmem:[%s542] sm:$0xff]
      %v1423 = vld [vmem:[%s8] sm:$0x1]
      %v1425 = vlaneseq
      %v1426 = vshrl.u32 %v1425, 7
      %v1427 = vsub.s32 0, %v1426
      %v1428 = vrot.slane %v1423, %v1427
      %vm1430 = vcmask 64512
      %v1432 = vsel %vm1430, %v1406, 0
      %v1435 = vsel %vm1430, %v1407, 0
      %v1438 = vsel %vm1430, %v1408, 0
      %v1441 = vsel %vm1430, %v1409, 0
      %v1444 = vsel %vm1430, %v1410, 0
      %v1447 = vsel %vm1430, %v1411, 0
      %v1450 = vsel %vm1430, %v1412, 0
      %v1453 = vsel %vm1430, %v1413, 0
      %v1456 = vsel %vm1430, %v1414, 0
      %v1459 = vsel %vm1430, %v1415, 0
      %v1462 = vsel %vm1430, %v1416, 0
      %v1465 = vsel %vm1430, %v1417, 0
      %v1468 = vsel %vm1430, %v1418, 0
      %v1471 = vsel %vm1430, %v1419, 0
      %v1474 = vsel %vm1430, %v1420, 0
      %v1477 = vsel %vm1430, %v1421, 0
      %1479 = vmatprep.subr.mxu0 0.0
      %1480 = vmatpush1.msra.mxu0 0.0
      %1481 = vmatprep.subr.mxu0 0.0
      %1482 = vmatpush1.msra.mxu0 0.0
      %1483 = vmatprep.subr.mxu0 0.0
      %1484 = vmatpush1.msra.mxu0 0.0
      %1485 = vmatprep.subr.mxu0 0.0
      %1486 = vmatpush1.msra.mxu0 0.0
      %1487 = vmatprep.subr.mxu0 0.0
      %1488 = vmatpush1.msra.mxu0 0.0
      %1489 = vmatprep.subr.mxu0 0.0
      %1490 = vmatpush1.msra.mxu0 0.0
      %1491 = vmatprep.subr.mxu0 0.0
      %1492 = vmatpush1.msra.mxu0 0.0
      %1493 = vmatprep.subr.mxu0 0.0
      %1494 = vmatpush1.msra.mxu0 0.0
      %1495 = vmatprep.subr.mxu0 0.0
      %1496 = vmatpush1.msra.mxu0 0.0
      %1497 = vmatprep.subr.mxu0 0.0
      %1498 = vmatpush1.msra.mxu0 0.0
      %1499 = vmatprep.subr.mxu0 0.0
      %1500 = vmatpush1.msra.mxu0 0.0
      %1501 = vmatprep.subr.mxu0 0.0
      %1502 = vmatpush1.msra.mxu0 0.0
      %1503 = vmatprep.subr.mxu0 0.0
      %1504 = vmatpush1.msra.mxu0 0.0
      %1505 = vmatprep.subr.mxu0 0.0
      %1506 = vmatpush1.msra.mxu0 0.0
      %1507 = vmatprep.subr.mxu0 0.0
      %1508 = vmatpush1.msra.mxu0 0.0
      %1509 = vmatprep.subr.mxu0 0.0
      %1510 = vmatpush1.msra.mxu0 %v1422
      %1511 = vmatprep.subr.mxu0 0.0
      %1512 = vmatpush2.msra.mxu0 0.0
      %1513 = vmatprep.subr.mxu0 0.0
      %1514 = vmatpush2.msra.mxu0 0.0
      %1515 = vmatprep.subr.mxu0 0.0
      %1516 = vmatpush2.msra.mxu0 0.0
      %1517 = vmatprep.subr.mxu0 0.0
      %1518 = vmatpush2.msra.mxu0 0.0
      %1519 = vmatprep.subr.mxu0 0.0
      %1520 = vmatpush2.msra.mxu0 0.0
      %1521 = vmatprep.subr.mxu0 0.0
      %1522 = vmatpush2.msra.mxu0 0.0
      %1523 = vmatprep.subr.mxu0 0.0
      %1524 = vmatpush2.msra.mxu0 0.0
      %1525 = vmatprep.subr.mxu0 0.0
      %1526 = vmatpush2.msra.mxu0 0.0
      %1527 = vmatprep.subr.mxu0 0.0
      %1528 = vmatpush2.msra.mxu0 0.0
      %1529 = vmatprep.subr.mxu0 0.0
      %1530 = vmatpush2.msra.mxu0 0.0
      %1531 = vmatprep.subr.mxu0 0.0
      %1532 = vmatpush2.msra.mxu0 0.0
      %1533 = vmatprep.subr.mxu0 0.0
      %1534 = vmatpush2.msra.mxu0 0.0
      %1535 = vmatprep.subr.mxu0 0.0
      %1536 = vmatpush2.msra.mxu0 0.0
      %1537 = vmatprep.subr.mxu0 0.0
      %1538 = vmatpush2.msra.mxu0 0.0
      %1539 = vmatprep.subr.mxu0 0.0
      %1540 = vmatpush2.msra.mxu0 0.0
      %1541 = vmatprep.subr.mxu0 0.0
      %1542 = vmatpush2.msra.mxu0 0.0
      %1543 = vmatprep.mubr.f32.mxu0 0.0
      %1544 = vmatmul.mubr.f32.gmra.mxu0 %v1432
      %v1545 = vpop.f32.mrf.mxu0
      %v1546 = vadd.f32 %v1428, %v1545
      %v1547 = vpop.f32.mrf.mxu0
      %1548 = vmatprep.mubr.f32.mxu0 0.0
      %1549 = vmatmul.mubr.f32.gmra.mxu0 %v1435
      %v1550 = vpop.f32.mrf.mxu0
      %v1551 = vadd.f32 %v1428, %v1550
      %v1552 = vpop.f32.mrf.mxu0
      %1553 = vmatprep.mubr.f32.mxu0 0.0
      %1554 = vmatmul.mubr.f32.gmra.mxu0 %v1438
      %v1555 = vpop.f32.mrf.mxu0
      %v1556 = vadd.f32 %v1428, %v1555
      %v1557 = vpop.f32.mrf.mxu0
      %1558 = vmatprep.mubr.f32.mxu0 0.0
      %1559 = vmatmul.mubr.f32.gmra.mxu0 %v1441
      %v1560 = vpop.f32.mrf.mxu0
      %v1561 = vadd.f32 %v1428, %v1560
      %v1562 = vpop.f32.mrf.mxu0
      %1563 = vmatprep.mubr.f32.mxu0 0.0
      %1564 = vmatmul.mubr.f32.gmra.mxu0 %v1444
      %v1565 = vpop.f32.mrf.mxu0
      %v1566 = vadd.f32 %v1428, %v1565
      %v1567 = vpop.f32.mrf.mxu0
      %1568 = vmatprep.mubr.f32.mxu0 0.0
      %1569 = vmatmul.mubr.f32.gmra.mxu0 %v1447
      %v1570 = vpop.f32.mrf.mxu0
      %v1571 = vadd.f32 %v1428, %v1570
      %v1572 = vpop.f32.mrf.mxu0
      %1573 = vmatprep.mubr.f32.mxu0 0.0
      %1574 = vmatmul.mubr.f32.gmra.mxu0 %v1450
      %v1575 = vpop.f32.mrf.mxu0
      %v1576 = vadd.f32 %v1428, %v1575
      %v1577 = vpop.f32.mrf.mxu0
      %1578 = vmatprep.mubr.f32.mxu0 0.0
      %1579 = vmatmul.mubr.f32.gmra.mxu0 %v1453
      %v1580 = vpop.f32.mrf.mxu0
      %v1581 = vadd.f32 %v1428, %v1580
      %v1582 = vpop.f32.mrf.mxu0
      %1583 = vmatprep.mubr.f32.mxu0 0.0
      %1584 = vmatmul.mubr.f32.gmra.mxu0 %v1456
      %v1585 = vpop.f32.mrf.mxu0
      %v1586 = vadd.f32 %v1428, %v1585
      %v1587 = vpop.f32.mrf.mxu0
      %1588 = vmatprep.mubr.f32.mxu0 0.0
      %1589 = vmatmul.mubr.f32.gmra.mxu0 %v1459
      %v1590 = vpop.f32.mrf.mxu0
      %v1591 = vadd.f32 %v1428, %v1590
      %v1592 = vpop.f32.mrf.mxu0
      %1593 = vmatprep.mubr.f32.mxu0 0.0
      %1594 = vmatmul.mubr.f32.gmra.mxu0 %v1462
      %v1595 = vpop.f32.mrf.mxu0
      %v1596 = vadd.f32 %v1428, %v1595
      %v1597 = vpop.f32.mrf.mxu0
      %1598 = vmatprep.mubr.f32.mxu0 0.0
      %1599 = vmatmul.mubr.f32.gmra.mxu0 %v1465
      %v1600 = vpop.f32.mrf.mxu0
      %v1601 = vadd.f32 %v1428, %v1600
      %v1602 = vpop.f32.mrf.mxu0
      %1603 = vmatprep.mubr.f32.mxu0 0.0
      %1604 = vmatmul.mubr.f32.gmra.mxu0 %v1468
      %v1605 = vpop.f32.mrf.mxu0
      %v1606 = vadd.f32 %v1428, %v1605
      %v1607 = vpop.f32.mrf.mxu0
      %1608 = vmatprep.mubr.f32.mxu0 0.0
      %1609 = vmatmul.mubr.f32.gmra.mxu0 %v1471
      %v1610 = vpop.f32.mrf.mxu0
      %v1611 = vadd.f32 %v1428, %v1610
      %v1612 = vpop.f32.mrf.mxu0
      %1613 = vmatprep.mubr.f32.mxu0 0.0
      %1614 = vmatmul.mubr.f32.gmra.mxu0 %v1474
      %v1615 = vpop.f32.mrf.mxu0
      %v1616 = vadd.f32 %v1428, %v1615
      %v1617 = vpop.f32.mrf.mxu0
      %1618 = vmatprep.mubr.f32.mxu0 0.0
      %1619 = vmatmul.mubr.f32.gmra.mxu0 %v1477
      %v1620 = vpop.f32.mrf.mxu0
      %v1621 = vadd.f32 %v1428, %v1620
      %v1622 = vpop.f32.mrf.mxu0
      %1623 = vdwg.mxu0
      %v1624 = vadd.f32 %v1546, %v553
      %v1625 = vadd.f32 %v1551, %v554
      %v1626 = vadd.f32 %v1556, %v555
      %v1627 = vadd.f32 %v1561, %v556
      %v1628 = vadd.f32 %v1566, %v557
      %v1629 = vadd.f32 %v1571, %v558
      %v1630 = vadd.f32 %v1576, %v559
      %v1631 = vadd.f32 %v1581, %v560
      %v1632 = vadd.f32 %v1586, %v561
      %v1633 = vadd.f32 %v1591, %v562
      %v1634 = vadd.f32 %v1596, %v563
      %v1635 = vadd.f32 %v1601, %v564
      %v1636 = vadd.f32 %v1606, %v565
      %v1637 = vadd.f32 %v1611, %v566
      %v1638 = vadd.f32 %v1616, %v567
      %v1639 = vadd.f32 %v1621, %v568
      %1640 = vst.msk [vmem:[%s551] sm:$0xff] %vm581, %v1624
      %1641 = vst.msk [vmem:[%s551 + $0x8] sm:$0xff] %vm581, %v1625
      %1642 = vst.msk [vmem:[%s551 + $0x10] sm:$0xff] %vm581, %v1626
      %1643 = vst.msk [vmem:[%s551 + $0x18] sm:$0xff] %vm581, %v1627
      %1644 = vst.msk [vmem:[%s551 + $0x20] sm:$0xff] %vm581, %v1628
      %1645 = vst.msk [vmem:[%s551 + $0x28] sm:$0xff] %vm581, %v1629
      %1646 = vst.msk [vmem:[%s551 + $0x30] sm:$0xff] %vm581, %v1630
      %1647 = vst.msk [vmem:[%s551 + $0x38] sm:$0xff] %vm581, %v1631
      %1648 = vst.msk [vmem:[%s551 + $0x40] sm:$0xff] %vm581, %v1632
      %1649 = vst.msk [vmem:[%s551 + $0x48] sm:$0xff] %vm581, %v1633
      %1650 = vst.msk [vmem:[%s551 + $0x50] sm:$0xff] %vm581, %v1634
      %1651 = vst.msk [vmem:[%s551 + $0x58] sm:$0xff] %vm581, %v1635
      %1652 = vst.msk [vmem:[%s551 + $0x60] sm:$0xff] %vm581, %v1636
      %1653 = vst.msk [vmem:[%s551 + $0x68] sm:$0xff] %vm581, %v1637
      %1654 = vst.msk [vmem:[%s551 + $0x70] sm:$0xff] %vm581, %v1638
      %1655 = vst.msk [vmem:[%s551 + $0x78] sm:$0xff] %vm581, %v1639
      %s1656 = smul.u32 16, %s25
      %p1657 = scmp.lt.s32.totalorder %s24, 1
      %s1658 = scalar_select %p1657, %s24, 1
      %p1659 = scmp.lt.s32.totalorder %s1656, 31
      %s1660 = scalar_select %p1659, %s1656, 31
      %s1661 = smul.addr %s1658, 32
      %s1662 = sadd.s32 %s1660, %s1661
      %s1663 = smul.addr %s1662, 8
      %s1664 = scalar_lea.vmem %s9, %s1663
      // Predicated region
      $region57: #{cond_conv_residual_forward.1} parent=55 // pred_check
        %p1665 = pneg %p293
      $region58: #{cond_conv_residual_forward.1} parent=55 // pred_check_branch
        %1667 = sbr.rel (%p1665) target = $region60
      $region59: #{cond_conv_residual_forward.1} parent=55 // pred_region
        %s1668 = smul.u32 16, %s25
      $region60: #{cond_conv_residual_forward.1} parent=55 // pred_fallthru
        _
    $region56: #{cond_conv_residual_forward.1} parent=5 // pred_fallthru
      _
    %p1669 = scmp.le.s32.totalorder 2, %s15
    // Predicated region
    $region61: #{cond_conv_residual_forward.1} parent=5 // pred_check
      %p1670 = pneg %p1669
    $region62: #{cond_conv_residual_forward.1} parent=5 // pred_check_branch
      %1672 = sbr.rel (%p1670) target = $region64
    $region63: #{cond_conv_residual_forward.1} parent=5 // pred_region
      %s1673 = ssub.s32 %s15, 2
      // Predicated region
      $region65: #{cond_conv_residual_forward.1} parent=63 // pred_check
        %p1674 = pneg %p299
      $region66: #{cond_conv_residual_forward.1} parent=63 // pred_check_branch
        %1676 = sbr.rel (%p1674) target = $region68
      $region67: #{cond_conv_residual_forward.1} parent=63 // pred_region
        %s1677 = smul.u32 16, %s27
        %p1678 = scmp.lt.s32.totalorder %s26, 1
        %s1679 = scalar_select %p1678, %s26, 1
        %p1680 = scmp.lt.s32.totalorder %s1677, 31
        %s1681 = scalar_select %p1680, %s1677, 31
        %s1682 = smul.addr %s1679, 32
        %s1683 = sadd.s32 %s1681, %s1682
        %s1684 = smul.addr %s1683, 8
        %s1685 = scalar_lea.vmem %s9, %s1684
      $region68: #{cond_conv_residual_forward.1} parent=63 // pred_fallthru
        _
    $region64: #{cond_conv_residual_forward.1} parent=5 // pred_fallthru
      _
  $region6: #{cond_conv_residual_forward.1} parent=0 // loop_footer
    %s19 = sadd.s32 1, %s15
  $region7: #{cond_conv_residual_forward.1} parent=0 // loop_footer_branch
    %14 = sbr.rel target = $region3
  $region8: #{cond_conv_residual_forward.1} parent=0 // loop_exit
    _

</llo_original>
